<compile_context>
chip_gen: v7x
topology: tpu7x:2x2x1
jax: 0.10.0
libtpu: 0.0.40
codegen_flags: <defaults>
</compile_context>

<pallas_src>
import functools

import jax
import jax.numpy as jnp
from jax.experimental import pallas as pl
from jax.experimental.pallas import tpu as pltpu

IN_DIM = 100
K_PAD = 128            # layer-1 contraction padded to lane width
HID = 256
OUT_DIM = 784          # stored unpadded (full last dim); 6x128 chunks + 16 tail
N_CHUNK = 128          # layer-3 N chunk (multiple of 128)


def _round_up(n, m):
    return ((n + m - 1) // m) * m


def _tpu_generation():
    """Crude device-generation sniff ('v5' / 'v6' / 'v7' / None)."""
    try:
        kind = jax.devices()[0].device_kind.lower()
    except Exception:
        return None
    for g in ("v7", "v6", "v5"):
        if g in kind:
            return g
    return None


def generator_kernel(x_ref, w1_ref, b1_ref, w2_ref, b2_ref, w3_ref, b3_ref,
                     o_ref, *, tanh_dtype):
    # Layer 1: Linear(128 -> 256) + ReLU. bf16 MXU inputs, fp32 accumulate.
    h1 = jnp.dot(x_ref[...], w1_ref[...], preferred_element_type=jnp.float32)
    h1 = jnp.maximum(h1 + b1_ref[...], 0.0)

    # Layer 2: Linear(256 -> 256) + ReLU.
    h2 = jnp.dot(h1.astype(jnp.bfloat16), w2_ref[...],
                 preferred_element_type=jnp.float32)
    h2 = jnp.maximum(h2 + b2_ref[...], 0.0)
    h2b = h2.astype(jnp.bfloat16)

    # Layer 3: Linear(256 -> 784) + Tanh, in 128-wide N chunks (last chunk is the
    # 16-lane tail 768:784).  Each chunk is stored immediately so the live fp32
    # h3 slab stays narrow even at tm=512 (vreg-pressure guard).
    for s in range(0, OUT_DIM, N_CHUNK):              # static slices, unrolled
        e = min(s + N_CHUNK, OUT_DIM)
        h3 = jnp.dot(h2b, w3_ref[:, s:e], preferred_element_type=jnp.float32)
        y = h3 + b3_ref[:, s:e]
        # bf16 tanh on v6e/v7x (bf16 EUP), fp32 tanh on v5e/unknown.
        o_ref[:, s:e] = jnp.tanh(y.astype(tanh_dtype)).astype(o_ref.dtype)


def prepare_params(params):
    """One-time pad + bf16 cast of the fp32 PyTorch-style parameters."""
    w1, b1, w2, b2, w3, b3 = params
    w1p = jnp.zeros((K_PAD, HID), jnp.float32).at[:IN_DIM, :].set(w1)
    return (w1p.astype(jnp.bfloat16), b1.astype(jnp.float32),
            w2.astype(jnp.bfloat16), b2.astype(jnp.float32),
            w3.astype(jnp.bfloat16), b3.astype(jnp.float32))


def generator_forward(x, prepared_params, *, tm=512):
    """x: (B, 100) float32 -> (B, 784) float32."""
    w1, b1, w2, b2, w3, b3 = prepared_params
    B = x.shape[0]

    gen = _tpu_generation()
    is_v5 = gen == "v5"
    is_v7 = gen == "v7"

    # Batch tile: large (amortize per-step overhead, fill the MXU) but clamped
    # to the (sublane-rounded) batch.
    tm_eff = min(tm, _round_up(B, 8))
    B_pad = _round_up(B, tm_eff)
    # v7x only (2 TensorCores): prefer >=2 grid steps so the batch axis can be
    # split across cores.  On single-TC v5e/v6e this would only add overhead.
    if is_v7 and B_pad == tm_eff and B_pad >= 16:
        tm_eff = _round_up(B_pad // 2, 8)
        B_pad = _round_up(B, tm_eff)

    # Pad batch and the K=100 contraction dim in one op; bf16 for the MXU.
    xp = jnp.pad(x.astype(jnp.bfloat16), ((0, B_pad - B), (0, K_PAD - IN_DIM)))

    grid = (B_pad // tm_eff,)
    if is_v7 and grid[0] >= 2:
        dim_sem = (pltpu.CORE_PARALLEL,)   # actually shard batch across the 2 TCs
    else:
        dim_sem = ("parallel",)

    tanh_dtype = jnp.float32 if (is_v5 or gen is None) else jnp.bfloat16

    # VMEM at tm=512: ~4.6 MiB double-buffered (out 3.1 MiB, weights ~1.2 MiB),
    # well under every generation's default scoped limit -> no vmem_limit needed.
    out = pl.pallas_call(
        functools.partial(generator_kernel, tanh_dtype=tanh_dtype),
        out_shape=jax.ShapeDtypeStruct((B_pad, OUT_DIM), jnp.float32),
        grid_spec=pltpu.PrefetchScalarGridSpec(
            num_scalar_prefetch=0,
            grid=grid,
            in_specs=[
                pl.BlockSpec((tm_eff, K_PAD), lambda i: (i, 0)),   # x tile (bf16)
                pl.BlockSpec((K_PAD, HID), lambda i: (0, 0)),      # w1 (bf16, full)
                pl.BlockSpec((1, HID), lambda i: (0, 0)),          # b1 (f32)
                pl.BlockSpec((HID, HID), lambda i: (0, 0)),        # w2 (bf16, full)
                pl.BlockSpec((1, HID), lambda i: (0, 0)),          # b2 (f32)
                pl.BlockSpec((HID, OUT_DIM), lambda i: (0, 0)),    # w3 (bf16, full)
                pl.BlockSpec((1, OUT_DIM), lambda i: (0, 0)),      # b3 (f32)
            ],
            out_specs=pl.BlockSpec((tm_eff, OUT_DIM), lambda i: (i, 0)),
        ),
        compiler_params=pltpu.CompilerParams(dimension_semantics=dim_sem),
    )(xp, w1, b1, w2, b2, w3, b3)

    # Only a row slice (pad rows contain tanh(b3)); no column slice anymore.
    return out[:B] if B_pad != B else out


def init_params(key):
    """Deterministic init matching the nn.Linear shapes of the PyTorch module.

    Weights stored as (in_features, out_features) so y = x @ W + b matches
    PyTorch nn.Linear (which does x @ W.T with W (out, in))."""
    k1, k2, k3, k4, k5, k6 = jax.random.split(key, 6)

    def lin(kw, kb, fan_in, fan_out):
        bound = 1.0 / jnp.sqrt(fan_in)
        w = jax.random.uniform(kw, (fan_in, fan_out), jnp.float32, -bound, bound)
        b = jax.random.uniform(kb, (1, fan_out), jnp.float32, -bound, bound)
        return w, b

    w1, b1 = lin(k1, k2, IN_DIM, HID)
    w2, b2 = lin(k3, k4, HID, HID)
    w3, b3 = lin(k5, k6, HID, OUT_DIM)
    return (w1, b1, w2, b2, w3, b3)


def reference_forward_fp32(x, params):
    w1, b1, w2, b2, w3, b3 = params
    h = jnp.maximum(x @ w1 + b1, 0.0)
    h = jnp.maximum(h @ w2 + b2, 0.0)
    return jnp.tanh(h @ w3 + b3)


def reference_forward_bf16(x, params, tanh_dtype=jnp.float32):
    """Emulates the kernel's numerics: bf16 MXU inputs, fp32 accumulation,
    tanh computed in `tanh_dtype`."""
    w1, b1, w2, b2, w3, b3 = params
    bf = jnp.bfloat16
    h = jnp.dot(x.astype(bf), w1.astype(bf), preferred_element_type=jnp.float32) + b1
    h = jnp.maximum(h, 0.0)
    h = jnp.dot(h.astype(bf), w2.astype(bf), preferred_element_type=jnp.float32) + b2
    h = jnp.maximum(h, 0.0)
    y = jnp.dot(h.astype(bf), w3.astype(bf), preferred_element_type=jnp.float32) + b3
    return jnp.tanh(y.astype(tanh_dtype)).astype(jnp.float32)


def _check(x, params, prepared):
    gen = _tpu_generation()
    tanh_dtype = jnp.float32 if (gen == "v5" or gen is None) else jnp.bfloat16
    out = jax.block_until_ready(generator_forward(x, prepared))
    assert out.shape == (x.shape[0], OUT_DIM)
    # Tight check against a reference emulating the kernel's numerics.
    tol = 2e-3 if tanh_dtype == jnp.float32 else 2e-2
    ref = reference_forward_bf16(x, params, tanh_dtype)
    assert jnp.allclose(out, ref, atol=tol, rtol=tol)
    # Loose check against the pure-fp32 PyTorch-equivalent reference.
    ref_f32 = reference_forward_fp32(x, params)
    assert jnp.allclose(out, ref_f32, atol=5e-2, rtol=5e-2)


if __name__ == "__main__":
    key = jax.random.PRNGKey(0)
    kx1, kx2, kp = jax.random.split(key, 3)
    params = init_params(kp)
    prepared = prepare_params(params)

    # Small batch (single grid step, sublane-rounded tile).
    _check(jax.random.normal(kx1, (8, IN_DIM), jnp.float32), params, prepared)
    # Batch that exercises row padding (37 -> padded to 40).
    _check(jax.random.normal(kx2, (37, IN_DIM), jnp.float32), params, prepared)

    print("KERNEL_OK")
</pallas_src>

<mosaic_0001>
module attributes {stable_mosaic.version = 11 : i64} {
  func.func @generator_kernel(%arg0: i32, %arg1: memref<8x128xbf16, #tpu.memory_space<vmem>>, %arg2: memref<128x256xbf16, #tpu.memory_space<vmem>>, %arg3: memref<1x256xf32, #tpu.memory_space<vmem>>, %arg4: memref<256x256xbf16, #tpu.memory_space<vmem>>, %arg5: memref<1x256xf32, #tpu.memory_space<vmem>>, %arg6: memref<256x784xbf16, #tpu.memory_space<vmem>>, %arg7: memref<1x784xf32, #tpu.memory_space<vmem>>, %arg8: memref<8x784xf32, #tpu.memory_space<vmem>>) attributes {dimension_semantics = [#tpu.dimension_semantics<parallel>], iteration_bounds = array<i64: 1>, scalar_prefetch = 0 : i64, scratch_operands = 0 : i64, tpu.core_type = #tpu.core_type<tc>, window_params = [{transform_indices = @transform_0, window_bounds = array<i64: 8, 128>}, {pipeline_mode = #tpu.pipeline_mode<synchronous>, transform_indices = @transform_1, window_bounds = array<i64: 128, 256>}, {pipeline_mode = #tpu.pipeline_mode<synchronous>, transform_indices = @transform_2, window_bounds = array<i64: 1, 256>}, {pipeline_mode = #tpu.pipeline_mode<synchronous>, transform_indices = @transform_3, window_bounds = array<i64: 256, 256>}, {pipeline_mode = #tpu.pipeline_mode<synchronous>, transform_indices = @transform_4, window_bounds = array<i64: 1, 256>}, {pipeline_mode = #tpu.pipeline_mode<synchronous>, transform_indices = @transform_5, window_bounds = array<i64: 256, 784>}, {pipeline_mode = #tpu.pipeline_mode<synchronous>, transform_indices = @transform_6, window_bounds = array<i64: 1, 784>}, {transform_indices = @transform_7, window_bounds = array<i64: 8, 784>}]} {
    %c0 = arith.constant 0 : index
    %c0_0 = arith.constant 0 : index
    %0 = vector.load %arg1[%c0, %c0_0] : memref<8x128xbf16, #tpu.memory_space<vmem>>, vector<8x128xbf16>
    %c0_1 = arith.constant 0 : index
    %c0_2 = arith.constant 0 : index
    %1 = vector.load %arg2[%c0_1, %c0_2] : memref<128x256xbf16, #tpu.memory_space<vmem>>, vector<128x256xbf16>
    %cst = arith.constant dense<0.000000e+00> : vector<8x256xf32>
    %2 = tpu.matmul %0, %1, %cst {dimension_numbers = #tpu.dot_dimension_numbers<[1], [0], [0], [1], [0, 0, 1, 1], [], []>} : vector<8x128xbf16>, vector<128x256xbf16>, vector<8x256xf32> -> vector<8x256xf32>
    %c0_3 = arith.constant 0 : index
    %c0_4 = arith.constant 0 : index
    %3 = vector.load %arg3[%c0_3, %c0_4] : memref<1x256xf32, #tpu.memory_space<vmem>>, vector<1x256xf32>
    %4 = vector.broadcast %3 : vector<1x256xf32> to vector<8x256xf32>
    %5 = arith.addf %2, %4 : vector<8x256xf32>
    %cst_5 = arith.constant 0.000000e+00 : f32
    %6 = vector.broadcast %cst_5 : f32 to vector<8x256xf32>
    %7 = arith.maximumf %5, %6 : vector<8x256xf32>
    %8 = arith.truncf %7 : vector<8x256xf32> to vector<8x256xbf16>
    %c0_6 = arith.constant 0 : index
    %c0_7 = arith.constant 0 : index
    %9 = vector.load %arg4[%c0_6, %c0_7] : memref<256x256xbf16, #tpu.memory_space<vmem>>, vector<256x256xbf16>
    %cst_8 = arith.constant dense<0.000000e+00> : vector<8x256xf32>
    %10 = tpu.matmul %8, %9, %cst_8 {dimension_numbers = #tpu.dot_dimension_numbers<[1], [0], [0], [1], [0, 0, 1, 1], [], []>} : vector<8x256xbf16>, vector<256x256xbf16>, vector<8x256xf32> -> vector<8x256xf32>
    %c0_9 = arith.constant 0 : index
    %c0_10 = arith.constant 0 : index
    %11 = vector.load %arg5[%c0_9, %c0_10] : memref<1x256xf32, #tpu.memory_space<vmem>>, vector<1x256xf32>
    %12 = vector.broadcast %11 : vector<1x256xf32> to vector<8x256xf32>
    %13 = arith.addf %10, %12 : vector<8x256xf32>
    %cst_11 = arith.constant 0.000000e+00 : f32
    %14 = vector.broadcast %cst_11 : f32 to vector<8x256xf32>
    %15 = arith.maximumf %13, %14 : vector<8x256xf32>
    %16 = arith.truncf %15 : vector<8x256xf32> to vector<8x256xbf16>
    %c0_12 = arith.constant 0 : index
    %c0_13 = arith.constant 0 : index
    %17 = vector.load %arg6[%c0_12, %c0_13] : memref<256x784xbf16, #tpu.memory_space<vmem>>, vector<256x128xbf16>
    %cst_14 = arith.constant dense<0.000000e+00> : vector<8x128xf32>
    %18 = tpu.matmul %16, %17, %cst_14 {dimension_numbers = #tpu.dot_dimension_numbers<[1], [0], [0], [1], [0, 0, 1, 1], [], []>} : vector<8x256xbf16>, vector<256x128xbf16>, vector<8x128xf32> -> vector<8x128xf32>
    %c0_15 = arith.constant 0 : index
    %c0_16 = arith.constant 0 : index
    %19 = vector.load %arg7[%c0_15, %c0_16] : memref<1x784xf32, #tpu.memory_space<vmem>>, vector<1x128xf32>
    %20 = vector.broadcast %19 : vector<1x128xf32> to vector<8x128xf32>
    %21 = arith.addf %18, %20 : vector<8x128xf32>
    %22 = math.tanh %21 : vector<8x128xf32>
    %c0_17 = arith.constant 0 : index
    %c0_18 = arith.constant 0 : index
    %23 = vector.load %arg8[%c0_17, %c0_18] : memref<8x784xf32, #tpu.memory_space<vmem>>, vector<8x128xf32>
    tpu.vector_store %arg8[%c0_17, %c0_18], %22 {strides = array<i32>} : memref<8x784xf32, #tpu.memory_space<vmem>>, vector<8x128xf32>,
    %c0_19 = arith.constant 0 : index
    %c128 = arith.constant 128 : index
    %24 = vector.load %arg6[%c0_19, %c128] : memref<256x784xbf16, #tpu.memory_space<vmem>>, vector<256x128xbf16>
    %cst_20 = arith.constant dense<0.000000e+00> : vector<8x128xf32>
    %25 = tpu.matmul %16, %24, %cst_20 {dimension_numbers = #tpu.dot_dimension_numbers<[1], [0], [0], [1], [0, 0, 1, 1], [], []>} : vector<8x256xbf16>, vector<256x128xbf16>, vector<8x128xf32> -> vector<8x128xf32>
    %c0_21 = arith.constant 0 : index
    %c128_22 = arith.constant 128 : index
    %26 = vector.load %arg7[%c0_21, %c128_22] : memref<1x784xf32, #tpu.memory_space<vmem>>, vector<1x128xf32>
    %27 = vector.broadcast %26 : vector<1x128xf32> to vector<8x128xf32>
    %28 = arith.addf %25, %27 : vector<8x128xf32>
    %29 = math.tanh %28 : vector<8x128xf32>
    %c0_23 = arith.constant 0 : index
    %c128_24 = arith.constant 128 : index
    %30 = vector.load %arg8[%c0_23, %c128_24] : memref<8x784xf32, #tpu.memory_space<vmem>>, vector<8x128xf32>
    tpu.vector_store %arg8[%c0_23, %c128_24], %29 {strides = array<i32>} : memref<8x784xf32, #tpu.memory_space<vmem>>, vector<8x128xf32>,
    %c0_25 = arith.constant 0 : index
    %c256 = arith.constant 256 : index
    %31 = vector.load %arg6[%c0_25, %c256] : memref<256x784xbf16, #tpu.memory_space<vmem>>, vector<256x128xbf16>
    %cst_26 = arith.constant dense<0.000000e+00> : vector<8x128xf32>
    %32 = tpu.matmul %16, %31, %cst_26 {dimension_numbers = #tpu.dot_dimension_numbers<[1], [0], [0], [1], [0, 0, 1, 1], [], []>} : vector<8x256xbf16>, vector<256x128xbf16>, vector<8x128xf32> -> vector<8x128xf32>
    %c0_27 = arith.constant 0 : index
    %c256_28 = arith.constant 256 : index
    %33 = vector.load %arg7[%c0_27, %c256_28] : memref<1x784xf32, #tpu.memory_space<vmem>>, vector<1x128xf32>
    %34 = vector.broadcast %33 : vector<1x128xf32> to vector<8x128xf32>
    %35 = arith.addf %32, %34 : vector<8x128xf32>
    %36 = math.tanh %35 : vector<8x128xf32>
    %c0_29 = arith.constant 0 : index
    %c256_30 = arith.constant 256 : index
    %37 = vector.load %arg8[%c0_29, %c256_30] : memref<8x784xf32, #tpu.memory_space<vmem>>, vector<8x128xf32>
    tpu.vector_store %arg8[%c0_29, %c256_30], %36 {strides = array<i32>} : memref<8x784xf32, #tpu.memory_space<vmem>>, vector<8x128xf32>,
    %c0_31 = arith.constant 0 : index
    %c384 = arith.constant 384 : index
    %38 = vector.load %arg6[%c0_31, %c384] : memref<256x784xbf16, #tpu.memory_space<vmem>>, vector<256x128xbf16>
    %cst_32 = arith.constant dense<0.000000e+00> : vector<8x128xf32>
    %39 = tpu.matmul %16, %38, %cst_32 {dimension_numbers = #tpu.dot_dimension_numbers<[1], [0], [0], [1], [0, 0, 1, 1], [], []>} : vector<8x256xbf16>, vector<256x128xbf16>, vector<8x128xf32> -> vector<8x128xf32>
    %c0_33 = arith.constant 0 : index
    %c384_34 = arith.constant 384 : index
    %40 = vector.load %arg7[%c0_33, %c384_34] : memref<1x784xf32, #tpu.memory_space<vmem>>, vector<1x128xf32>
    %41 = vector.broadcast %40 : vector<1x128xf32> to vector<8x128xf32>
    %42 = arith.addf %39, %41 : vector<8x128xf32>
    %43 = math.tanh %42 : vector<8x128xf32>
    %c0_35 = arith.constant 0 : index
    %c384_36 = arith.constant 384 : index
    %44 = vector.load %arg8[%c0_35, %c384_36] : memref<8x784xf32, #tpu.memory_space<vmem>>, vector<8x128xf32>
    tpu.vector_store %arg8[%c0_35, %c384_36], %43 {strides = array<i32>} : memref<8x784xf32, #tpu.memory_space<vmem>>, vector<8x128xf32>,
    %c0_37 = arith.constant 0 : index
    %c512 = arith.constant 512 : index
    %45 = vector.load %arg6[%c0_37, %c512] : memref<256x784xbf16, #tpu.memory_space<vmem>>, vector<256x128xbf16>
    %cst_38 = arith.constant dense<0.000000e+00> : vector<8x128xf32>
    %46 = tpu.matmul %16, %45, %cst_38 {dimension_numbers = #tpu.dot_dimension_numbers<[1], [0], [0], [1], [0, 0, 1, 1], [], []>} : vector<8x256xbf16>, vector<256x128xbf16>, vector<8x128xf32> -> vector<8x128xf32>
    %c0_39 = arith.constant 0 : index
    %c512_40 = arith.constant 512 : index
    %47 = vector.load %arg7[%c0_39, %c512_40] : memref<1x784xf32, #tpu.memory_space<vmem>>, vector<1x128xf32>
    %48 = vector.broadcast %47 : vector<1x128xf32> to vector<8x128xf32>
    %49 = arith.addf %46, %48 : vector<8x128xf32>
    %50 = math.tanh %49 : vector<8x128xf32>
    %c0_41 = arith.constant 0 : index
    %c512_42 = arith.constant 512 : index
    %51 = vector.load %arg8[%c0_41, %c512_42] : memref<8x784xf32, #tpu.memory_space<vmem>>, vector<8x128xf32>
    tpu.vector_store %arg8[%c0_41, %c512_42], %50 {strides = array<i32>} : memref<8x784xf32, #tpu.memory_space<vmem>>, vector<8x128xf32>,
    %c0_43 = arith.constant 0 : index
    %c640 = arith.constant 640 : index
    %52 = vector.load %arg6[%c0_43, %c640] : memref<256x784xbf16, #tpu.memory_space<vmem>>, vector<256x128xbf16>
    %cst_44 = arith.constant dense<0.000000e+00> : vector<8x128xf32>
    %53 = tpu.matmul %16, %52, %cst_44 {dimension_numbers = #tpu.dot_dimension_numbers<[1], [0], [0], [1], [0, 0, 1, 1], [], []>} : vector<8x256xbf16>, vector<256x128xbf16>, vector<8x128xf32> -> vector<8x128xf32>
    %c0_45 = arith.constant 0 : index
    %c640_46 = arith.constant 640 : index
    %54 = vector.load %arg7[%c0_45, %c640_46] : memref<1x784xf32, #tpu.memory_space<vmem>>, vector<1x128xf32>
    %55 = vector.broadcast %54 : vector<1x128xf32> to vector<8x128xf32>
    %56 = arith.addf %53, %55 : vector<8x128xf32>
    %57 = math.tanh %56 : vector<8x128xf32>
    %c0_47 = arith.constant 0 : index
    %c640_48 = arith.constant 640 : index
    %58 = vector.load %arg8[%c0_47, %c640_48] : memref<8x784xf32, #tpu.memory_space<vmem>>, vector<8x128xf32>
    tpu.vector_store %arg8[%c0_47, %c640_48], %57 {strides = array<i32>} : memref<8x784xf32, #tpu.memory_space<vmem>>, vector<8x128xf32>,
    %c0_49 = arith.constant 0 : index
    %c768 = arith.constant 768 : index
    %59 = vector.load %arg6[%c0_49, %c768] : memref<256x784xbf16, #tpu.memory_space<vmem>>, vector<256x16xbf16>
    %cst_50 = arith.constant dense<0.000000e+00> : vector<8x16xf32>
    %60 = tpu.matmul %16, %59, %cst_50 {dimension_numbers = #tpu.dot_dimension_numbers<[1], [0], [0], [1], [0, 0, 1, 1], [], []>} : vector<8x256xbf16>, vector<256x16xbf16>, vector<8x16xf32> -> vector<8x16xf32>
    %c0_51 = arith.constant 0 : index
    %c768_52 = arith.constant 768 : index
    %61 = vector.load %arg7[%c0_51, %c768_52] : memref<1x784xf32, #tpu.memory_space<vmem>>, vector<1x16xf32>
    %62 = vector.broadcast %61 : vector<1x16xf32> to vector<8x16xf32>
    %63 = arith.addf %60, %62 : vector<8x16xf32>
    %64 = math.tanh %63 : vector<8x16xf32>
    %c0_53 = arith.constant 0 : index
    %c768_54 = arith.constant 768 : index
    %65 = vector.load %arg8[%c0_53, %c768_54] : memref<8x784xf32, #tpu.memory_space<vmem>>, vector<8x16xf32>
    tpu.vector_store %arg8[%c0_53, %c768_54], %64 {strides = array<i32>} : memref<8x784xf32, #tpu.memory_space<vmem>>, vector<8x16xf32>,
    return
  }
  func.func @transform_0(%arg0: i32) -> (i32, i32) {
    %c0_i32 = arith.constant 0 : i32
    %c0_i32_0 = arith.constant 0 : i32
    return %arg0, %c0_i32 : i32, i32
  }
  func.func @transform_1(%arg0: i32) -> (i32, i32) {
    %c0_i32 = arith.constant 0 : i32
    %c0_i32_0 = arith.constant 0 : i32
    %c0_i32_1 = arith.constant 0 : i32
    return %c0_i32, %c0_i32_0 : i32, i32
  }
  func.func @transform_2(%arg0: i32) -> (i32, i32) {
    %c0_i32 = arith.constant 0 : i32
    %c0_i32_0 = arith.constant 0 : i32
    %c0_i32_1 = arith.constant 0 : i32
    return %c0_i32, %c0_i32_0 : i32, i32
  }
  func.func @transform_3(%arg0: i32) -> (i32, i32) {
    %c0_i32 = arith.constant 0 : i32
    %c0_i32_0 = arith.constant 0 : i32
    %c0_i32_1 = arith.constant 0 : i32
    return %c0_i32, %c0_i32_0 : i32, i32
  }
  func.func @transform_4(%arg0: i32) -> (i32, i32) {
    %c0_i32 = arith.constant 0 : i32
    %c0_i32_0 = arith.constant 0 : i32
    %c0_i32_1 = arith.constant 0 : i32
    return %c0_i32, %c0_i32_0 : i32, i32
  }
  func.func @transform_5(%arg0: i32) -> (i32, i32) {
    %c0_i32 = arith.constant 0 : i32
    %c0_i32_0 = arith.constant 0 : i32
    %c0_i32_1 = arith.constant 0 : i32
    return %c0_i32, %c0_i32_0 : i32, i32
  }
  func.func @transform_6(%arg0: i32) -> (i32, i32) {
    %c0_i32 = arith.constant 0 : i32
    %c0_i32_0 = arith.constant 0 : i32
    %c0_i32_1 = arith.constant 0 : i32
    return %c0_i32, %c0_i32_0 : i32, i32
  }
  func.func @transform_7(%arg0: i32) -> (i32, i32) {
    %c0_i32 = arith.constant 0 : i32
    %c0_i32_0 = arith.constant 0 : i32
    return %arg0, %c0_i32 : i32, i32
  }
}

</mosaic_0001>

<llo_original>
// kernel: tpu_custom_call.1
$region0: #{tpu_custom_call.1}
  #allocation0 [shape = 'u32[]', space=smem, size = 0x4, offset = 0x4, fixed_abs, tag = 'smem constant byte address 0x4 - core index']
  #allocation1 [shape = 'u32[144,128]{1,0:T(1,128)}', space=vmem, size = 0x12000, scoped, tag = 'internal scratch']
  %s0 = inlined_call_operand.vmem [shape: bf16[8,128], index: 0, kind: input, shape index: {}]
  %s1 = inlined_call_operand.vmem [shape: bf16[128,256], index: 1, kind: input, shape index: {}]
  %s2 = inlined_call_operand.vmem [shape: f32[1,256], index: 2, kind: input, shape index: {}]
  %s3 = inlined_call_operand.vmem [shape: bf16[256,256], index: 3, kind: input, shape index: {}]
  %s4 = inlined_call_operand.vmem [shape: f32[1,256], index: 4, kind: input, shape index: {}]
  %s5 = inlined_call_operand.vmem [shape: bf16[256,784], index: 5, kind: input, shape index: {}]
  %s6 = inlined_call_operand.vmem [shape: f32[1,784], index: 6, kind: input, shape index: {}]
  %s7 = inlined_call_operand.hbm [shape: f32[8,784], index: 7, kind: output, shape index: {}]
  %s8 = sld [smem:[#allocation0]]
  $region38: #{tpu_custom_call.1} parent=0
    _
  %s10 = ssub.s32 1, %s8
  %s11 = scalar_select 0, %s10, %s8
  $region1: #{tpu_custom_call.1} parent=0
    #allocation2 [shape = 'u8[28672]{0}', space=vmem, size = 0x7000, scoped, tag = 'output window, operand 0, single buffered']
    #allocation3 [shape = 's32[1]{0}', space=sflag, size = 0x4, scoped, tag = 'scoped memory for tpu_custom_call.1']
    %12 = vsyncpa [#allocation3], 0
    // Predicated region
    $region2: #{tpu_custom_call.1} parent=1 // pred_check
      _
    $region3: #{tpu_custom_call.1} parent=1 // pred_check_branch
      %14 = sbr.rel (0) target = $region5
    $region4: #{tpu_custom_call.1} parent=1 // pred_region
      _
    $region5: #{tpu_custom_call.1} parent=1 // pred_fallthru
      _
    // Predicated region
    $region6: #{tpu_custom_call.1} parent=1 // pred_check
      _
    $region7: #{tpu_custom_call.1} parent=1 // pred_check_branch
      %16 = sbr.rel (0) target = $region9
    $region8: #{tpu_custom_call.1} parent=1 // pred_region
      _
    $region9: #{tpu_custom_call.1} parent=1 // pred_fallthru
      _
    // Predicated region
    $region10: #{tpu_custom_call.1} parent=1 // pred_check
      _
    $region11: #{tpu_custom_call.1} parent=1 // pred_check_branch
      %18 = sbr.rel (0) target = $region13
    $region12: #{tpu_custom_call.1} parent=1 // pred_region
      _
    $region13: #{tpu_custom_call.1} parent=1 // pred_fallthru
      _
    // Predicated region
    $region14: #{tpu_custom_call.1} parent=1 // pred_check
      _
    $region15: #{tpu_custom_call.1} parent=1 // pred_check_branch
      %20 = sbr.rel (0) target = $region17
    $region16: #{tpu_custom_call.1} parent=1 // pred_region
      _
    $region17: #{tpu_custom_call.1} parent=1 // pred_fallthru
      _
    // Predicated region
    $region18: #{tpu_custom_call.1} parent=1 // pred_check
      _
    $region19: #{tpu_custom_call.1} parent=1 // pred_check_branch
      %22 = sbr.rel (0) target = $region21
    $region20: #{tpu_custom_call.1} parent=1 // pred_region
      _
    $region21: #{tpu_custom_call.1} parent=1 // pred_fallthru
      _
    // Predicated region
    $region22: #{tpu_custom_call.1} parent=1 // pred_check
      _
    $region23: #{tpu_custom_call.1} parent=1 // pred_check_branch
      %24 = sbr.rel (0) target = $region25
    $region24: #{tpu_custom_call.1} parent=1 // pred_region
      _
    $region25: #{tpu_custom_call.1} parent=1 // pred_fallthru
      _
    // Predicated region
    $region26: #{tpu_custom_call.1} parent=1 // pred_check
      _
    $region27: #{tpu_custom_call.1} parent=1 // pred_check_branch
      %26 = sbr.rel (0) target = $region29
    $region28: #{tpu_custom_call.1} parent=1 // pred_region
      _
    $region29: #{tpu_custom_call.1} parent=1 // pred_fallthru
      _
    %v28 = vld [vmem:[%s0] sm:$0xf]
    %v29 = vld [vmem:[%s1] sm:$0xff]
    %v30 = vld [vmem:[%s1 + $0x8] sm:$0xff]
    %v31 = vld [vmem:[%s1 + $0x10] sm:$0xff]
    %v32 = vld [vmem:[%s1 + $0x18] sm:$0xff]
    %v33 = vld [vmem:[%s1 + $0x20] sm:$0xff]
    %v34 = vld [vmem:[%s1 + $0x28] sm:$0xff]
    %v35 = vld [vmem:[%s1 + $0x30] sm:$0xff]
    %v36 = vld [vmem:[%s1 + $0x38] sm:$0xff]
    %v37 = vld [vmem:[%s1 + $0x40] sm:$0xff]
    %v38 = vld [vmem:[%s1 + $0x48] sm:$0xff]
    %v39 = vld [vmem:[%s1 + $0x50] sm:$0xff]
    %v40 = vld [vmem:[%s1 + $0x58] sm:$0xff]
    %v41 = vld [vmem:[%s1 + $0x60] sm:$0xff]
    %v42 = vld [vmem:[%s1 + $0x68] sm:$0xff]
    %v43 = vld [vmem:[%s1 + $0x70] sm:$0xff]
    %v44 = vld [vmem:[%s1 + $0x78] sm:$0xff]
    %v45 = vld [vmem:[%s2] sm:$0x3]
    %v47 = vlaneseq
    %v48 = vshrl.u32 %v47, 7
    %v49 = vsub.s32 0, %v48
    %v50 = vrot.slane %v45, %v49
    %v51 = vlaneseq
    %v52 = vshrl.u32 %v51, 7
    %v53 = vsub.s32 1, %v52
    %v54 = vrot.slane %v45, %v53
    %v73 = vunpack.c.l.b16 %v29
    %v74 = vunpack.c.h.b16 %v29
    %v75 = vunpack.c.l.b16 %v30
    %v76 = vunpack.c.h.b16 %v30
    %v77 = vunpack.c.l.b16 %v31
    %v78 = vunpack.c.h.b16 %v31
    %v79 = vunpack.c.l.b16 %v32
    %v80 = vunpack.c.h.b16 %v32
    %v81 = vunpack.c.l.b16 %v33
    %v82 = vunpack.c.h.b16 %v33
    %v83 = vunpack.c.l.b16 %v34
    %v84 = vunpack.c.h.b16 %v34
    %v85 = vunpack.c.l.b16 %v35
    %v86 = vunpack.c.h.b16 %v35
    %v87 = vunpack.c.l.b16 %v36
    %v88 = vunpack.c.h.b16 %v36
    %v89 = vunpack.c.l.b16 %v37
    %v90 = vunpack.c.h.b16 %v37
    %v91 = vunpack.c.l.b16 %v38
    %v92 = vunpack.c.h.b16 %v38
    %v93 = vunpack.c.l.b16 %v39
    %v94 = vunpack.c.h.b16 %v39
    %v95 = vunpack.c.l.b16 %v40
    %v96 = vunpack.c.h.b16 %v40
    %v97 = vunpack.c.l.b16 %v41
    %v98 = vunpack.c.h.b16 %v41
    %v99 = vunpack.c.l.b16 %v42
    %v100 = vunpack.c.h.b16 %v42
    %v101 = vunpack.c.l.b16 %v43
    %v102 = vunpack.c.h.b16 %v43
    %v103 = vunpack.c.l.b16 %v44
    %v104 = vunpack.c.h.b16 %v44
    %v105 = vpack.c.b16 %v75, %v73
    %v106 = vpack.c.b16 %v76, %v74
    %v107 = vpack.c.b16 %v79, %v77
    %v108 = vpack.c.b16 %v80, %v78
    %v109 = vpack.c.b16 %v83, %v81
    %v110 = vpack.c.b16 %v84, %v82
    %v111 = vpack.c.b16 %v87, %v85
    %v112 = vpack.c.b16 %v88, %v86
    %v113 = vpack.c.b16 %v91, %v89
    %v114 = vpack.c.b16 %v92, %v90
    %v115 = vpack.c.b16 %v95, %v93
    %v116 = vpack.c.b16 %v96, %v94
    %v117 = vpack.c.b16 %v99, %v97
    %v118 = vpack.c.b16 %v100, %v98
    %v119 = vpack.c.b16 %v103, %v101
    %v120 = vpack.c.b16 %v104, %v102
    %137 = vmatprep.subr.bf16.mxu0 %v106
    %138 = vmatpush1.bf16.msra.mxu0 %v105
    %139 = vmatprep.subr.bf16.mxu0 %v108
    %140 = vmatpush1.bf16.msra.mxu0 %v107
    %141 = vmatprep.subr.bf16.mxu0 %v110
    %142 = vmatpush1.bf16.msra.mxu0 %v109
    %143 = vmatprep.subr.bf16.mxu0 %v112
    %144 = vmatpush1.bf16.msra.mxu0 %v111
    %145 = vmatprep.subr.bf16.mxu0 %v114
    %146 = vmatpush1.bf16.msra.mxu0 %v113
    %147 = vmatprep.subr.bf16.mxu0 %v116
    %148 = vmatpush1.bf16.msra.mxu0 %v115
    %149 = vmatprep.subr.bf16.mxu0 %v118
    %150 = vmatpush1.bf16.msra.mxu0 %v117
    %151 = vmatprep.subr.bf16.mxu0 %v120
    %152 = vmatpush1.bf16.msra.mxu0 %v119
    %153 = vmatprep.subr.bf16.mxu0 0
    %154 = vmatpush1.bf16.msra.mxu0 0
    %155 = vmatprep.subr.bf16.mxu0 0
    %156 = vmatpush1.bf16.msra.mxu0 0
    %157 = vmatprep.subr.bf16.mxu0 0
    %158 = vmatpush1.bf16.msra.mxu0 0
    %159 = vmatprep.subr.bf16.mxu0 0
    %160 = vmatpush1.bf16.msra.mxu0 0
    %161 = vmatprep.subr.bf16.mxu0 0
    %162 = vmatpush1.bf16.msra.mxu0 0
    %163 = vmatprep.subr.bf16.mxu0 0
    %164 = vmatpush1.bf16.msra.mxu0 0
    %165 = vmatprep.subr.bf16.mxu0 0
    %166 = vmatpush1.bf16.msra.mxu0 0
    %167 = vmatprep.subr.bf16.mxu0 0
    %168 = vmatpush1.bf16.msra.mxu0 0
    %169 = vmatprep.mubr.bf16.mxu0 0
    %170 = vmatmul.mubr.bf16.gmra.mrb[0].mxu0 %v28
    %v171 = vpop.f32.mrb[0].mxu0
    %v172 = vadd.f32 %v50, %v171
    %v173 = vpop.f32.mrb[0].mxu0
    %v174 = vadd.f32 %v54, %v173
    %v175 = vpop.f32.mrb[0].mxu0
    %v176 = vpop.f32.mrb[0].mxu0
    %177 = vdwg.mxu0
    %v178 = vmax.f32 %v172, 0.0
    %v179 = vmax.f32 %v174, 0.0
    %v180 = vpack.c.bf16 %v178, %v178
    %v181 = vpack.c.bf16 %v179, %v179
    %v182 = vld [vmem:[%s3] sm:$0xff]
    %v183 = vld [vmem:[%s3 + $0x8] sm:$0xff]
    %v184 = vld [vmem:[%s3 + $0x10] sm:$0xff]
    %v185 = vld [vmem:[%s3 + $0x18] sm:$0xff]
    %v186 = vld [vmem:[%s3 + $0x20] sm:$0xff]
    %v187 = vld [vmem:[%s3 + $0x28] sm:$0xff]
    %v188 = vld [vmem:[%s3 + $0x30] sm:$0xff]
    %v189 = vld [vmem:[%s3 + $0x38] sm:$0xff]
    %v190 = vld [vmem:[%s3 + $0x40] sm:$0xff]
    %v191 = vld [vmem:[%s3 + $0x48] sm:$0xff]
    %v192 = vld [vmem:[%s3 + $0x50] sm:$0xff]
    %v193 = vld [vmem:[%s3 + $0x58] sm:$0xff]
    %v194 = vld [vmem:[%s3 + $0x60] sm:$0xff]
    %v195 = vld [vmem:[%s3 + $0x68] sm:$0xff]
    %v196 = vld [vmem:[%s3 + $0x70] sm:$0xff]
    %v197 = vld [vmem:[%s3 + $0x78] sm:$0xff]
    %v198 = vld [vmem:[%s3 + $0x80] sm:$0xff]
    %v199 = vld [vmem:[%s3 + $0x88] sm:$0xff]
    %v200 = vld [vmem:[%s3 + $0x90] sm:$0xff]
    %v201 = vld [vmem:[%s3 + $0x98] sm:$0xff]
    %v202 = vld [vmem:[%s3 + $0xa0] sm:$0xff]
    %v203 = vld [vmem:[%s3 + $0xa8] sm:$0xff]
    %v204 = vld [vmem:[%s3 + $0xb0] sm:$0xff]
    %v205 = vld [vmem:[%s3 + $0xb8] sm:$0xff]
    %v206 = vld [vmem:[%s3 + $0xc0] sm:$0xff]
    %v207 = vld [vmem:[%s3 + $0xc8] sm:$0xff]
    %v208 = vld [vmem:[%s3 + $0xd0] sm:$0xff]
    %v209 = vld [vmem:[%s3 + $0xd8] sm:$0xff]
    %v210 = vld [vmem:[%s3 + $0xe0] sm:$0xff]
    %v211 = vld [vmem:[%s3 + $0xe8] sm:$0xff]
    %v212 = vld [vmem:[%s3 + $0xf0] sm:$0xff]
    %v213 = vld [vmem:[%s3 + $0xf8] sm:$0xff]
    %v214 = vld [vmem:[%s4] sm:$0x3]
    %v216 = vlaneseq
    %v217 = vshrl.u32 %v216, 7
    %v218 = vsub.s32 0, %v217
    %v219 = vrot.slane %v214, %v218
    %v220 = vlaneseq
    %v221 = vshrl.u32 %v220, 7
    %v222 = vsub.s32 1, %v221
    %v223 = vrot.slane %v214, %v222
    %v258 = vunpack.c.l.b16 %v182
    %v259 = vunpack.c.h.b16 %v182
    %v260 = vunpack.c.l.b16 %v183
    %v261 = vunpack.c.h.b16 %v183
    %v262 = vunpack.c.l.b16 %v184
    %v263 = vunpack.c.h.b16 %v184
    %v264 = vunpack.c.l.b16 %v185
    %v265 = vunpack.c.h.b16 %v185
    %v266 = vunpack.c.l.b16 %v186
    %v267 = vunpack.c.h.b16 %v186
    %v268 = vunpack.c.l.b16 %v187
    %v269 = vunpack.c.h.b16 %v187
    %v270 = vunpack.c.l.b16 %v188
    %v271 = vunpack.c.h.b16 %v188
    %v272 = vunpack.c.l.b16 %v189
    %v273 = vunpack.c.h.b16 %v189
    %v274 = vunpack.c.l.b16 %v190
    %v275 = vunpack.c.h.b16 %v190
    %v276 = vunpack.c.l.b16 %v191
    %v277 = vunpack.c.h.b16 %v191
    %v278 = vunpack.c.l.b16 %v192
    %v279 = vunpack.c.h.b16 %v192
    %v280 = vunpack.c.l.b16 %v193
    %v281 = vunpack.c.h.b16 %v193
    %v282 = vunpack.c.l.b16 %v194
    %v283 = vunpack.c.h.b16 %v194
    %v284 = vunpack.c.l.b16 %v195
    %v285 = vunpack.c.h.b16 %v195
    %v286 = vunpack.c.l.b16 %v196
    %v287 = vunpack.c.h.b16 %v196
    %v288 = vunpack.c.l.b16 %v197
    %v289 = vunpack.c.h.b16 %v197
    %v290 = vunpack.c.l.b16 %v198
    %v291 = vunpack.c.h.b16 %v198
    %v292 = vunpack.c.l.b16 %v199
    %v293 = vunpack.c.h.b16 %v199
    %v294 = vunpack.c.l.b16 %v200
    %v295 = vunpack.c.h.b16 %v200
    %v296 = vunpack.c.l.b16 %v201
    %v297 = vunpack.c.h.b16 %v201
    %v298 = vunpack.c.l.b16 %v202
    %v299 = vunpack.c.h.b16 %v202
    %v300 = vunpack.c.l.b16 %v203
    %v301 = vunpack.c.h.b16 %v203
    %v302 = vunpack.c.l.b16 %v204
    %v303 = vunpack.c.h.b16 %v204
    %v304 = vunpack.c.l.b16 %v205
    %v305 = vunpack.c.h.b16 %v205
    %v306 = vunpack.c.l.b16 %v206
    %v307 = vunpack.c.h.b16 %v206
    %v308 = vunpack.c.l.b16 %v207
    %v309 = vunpack.c.h.b16 %v207
    %v310 = vunpack.c.l.b16 %v208
    %v311 = vunpack.c.h.b16 %v208
    %v312 = vunpack.c.l.b16 %v209
    %v313 = vunpack.c.h.b16 %v209
    %v314 = vunpack.c.l.b16 %v210
    %v315 = vunpack.c.h.b16 %v210
    %v316 = vunpack.c.l.b16 %v211
    %v317 = vunpack.c.h.b16 %v211
    %v318 = vunpack.c.l.b16 %v212
    %v319 = vunpack.c.h.b16 %v212
    %v320 = vunpack.c.l.b16 %v213
    %v321 = vunpack.c.h.b16 %v213
    %v322 = vpack.c.b16 %v260, %v258
    %v323 = vpack.c.b16 %v261, %v259
    %v324 = vpack.c.b16 %v264, %v262
    %v325 = vpack.c.b16 %v265, %v263
    %v326 = vpack.c.b16 %v268, %v266
    %v327 = vpack.c.b16 %v269, %v267
    %v328 = vpack.c.b16 %v272, %v270
    %v329 = vpack.c.b16 %v273, %v271
    %v330 = vpack.c.b16 %v276, %v274
    %v331 = vpack.c.b16 %v277, %v275
    %v332 = vpack.c.b16 %v280, %v278
    %v333 = vpack.c.b16 %v281, %v279
    %v334 = vpack.c.b16 %v284, %v282
    %v335 = vpack.c.b16 %v285, %v283
    %v336 = vpack.c.b16 %v288, %v286
    %v337 = vpack.c.b16 %v289, %v287
    %v338 = vpack.c.b16 %v292, %v290
    %v339 = vpack.c.b16 %v293, %v291
    %v340 = vpack.c.b16 %v296, %v294
    %v341 = vpack.c.b16 %v297, %v295
    %v342 = vpack.c.b16 %v300, %v298
    %v343 = vpack.c.b16 %v301, %v299
    %v344 = vpack.c.b16 %v304, %v302
    %v345 = vpack.c.b16 %v305, %v303
    %v346 = vpack.c.b16 %v308, %v306
    %v347 = vpack.c.b16 %v309, %v307
    %v348 = vpack.c.b16 %v312, %v310
    %v349 = vpack.c.b16 %v313, %v311
    %v350 = vpack.c.b16 %v316, %v314
    %v351 = vpack.c.b16 %v317, %v315
    %v352 = vpack.c.b16 %v320, %v318
    %v353 = vpack.c.b16 %v321, %v319
    %386 = vmatprep.subr.bf16.mxu0 %v323
    %387 = vmatpush1.bf16.msra.mxu0 %v322
    %388 = vmatprep.subr.bf16.mxu0 %v325
    %389 = vmatpush1.bf16.msra.mxu0 %v324
    %390 = vmatprep.subr.bf16.mxu0 %v327
    %391 = vmatpush1.bf16.msra.mxu0 %v326
    %392 = vmatprep.subr.bf16.mxu0 %v329
    %393 = vmatpush1.bf16.msra.mxu0 %v328
    %394 = vmatprep.subr.bf16.mxu0 %v331
    %395 = vmatpush1.bf16.msra.mxu0 %v330
    %396 = vmatprep.subr.bf16.mxu0 %v333
    %397 = vmatpush1.bf16.msra.mxu0 %v332
    %398 = vmatprep.subr.bf16.mxu0 %v335
    %399 = vmatpush1.bf16.msra.mxu0 %v334
    %400 = vmatprep.subr.bf16.mxu0 %v337
    %401 = vmatpush1.bf16.msra.mxu0 %v336
    %402 = vmatprep.subr.bf16.mxu0 %v339
    %403 = vmatpush1.bf16.msra.mxu0 %v338
    %404 = vmatprep.subr.bf16.mxu0 %v341
    %405 = vmatpush1.bf16.msra.mxu0 %v340
    %406 = vmatprep.subr.bf16.mxu0 %v343
    %407 = vmatpush1.bf16.msra.mxu0 %v342
    %408 = vmatprep.subr.bf16.mxu0 %v345
    %409 = vmatpush1.bf16.msra.mxu0 %v344
    %410 = vmatprep.subr.bf16.mxu0 %v347
    %411 = vmatpush1.bf16.msra.mxu0 %v346
    %412 = vmatprep.subr.bf16.mxu0 %v349
    %413 = vmatpush1.bf16.msra.mxu0 %v348
    %414 = vmatprep.subr.bf16.mxu0 %v351
    %415 = vmatpush1.bf16.msra.mxu0 %v350
    %416 = vmatprep.subr.bf16.mxu0 %v353
    %417 = vmatpush1.bf16.msra.mxu0 %v352
    %418 = vmatprep.mubr.bf16.mxu0 %v181
    %419 = vmatmul.mubr.bf16.gmra.mrb[0].mxu0 %v180
    %v420 = vpop.f32.mrb[0].mxu0
    %v421 = vadd.f32 %v219, %v420
    %v422 = vpop.f32.mrb[0].mxu0
    %v423 = vadd.f32 %v223, %v422
    %v424 = vpop.f32.mrb[0].mxu0
    %v425 = vpop.f32.mrb[0].mxu0
    %426 = vdwg.mxu0
    %v427 = vmax.f32 %v421, 0.0
    %v428 = vmax.f32 %v423, 0.0
    %v429 = vpack.c.bf16 %v427, %v427
    %v430 = vpack.c.bf16 %v428, %v428
    %v431 = vld [vmem:[%s5] sm:$0xf]
    %v432 = vld [vmem:[%s5 + $0x1c] sm:$0xf]
    %v433 = vld [vmem:[%s5 + $0x38] sm:$0xf]
    %v434 = vld [vmem:[%s5 + $0x54] sm:$0xf]
    %v435 = vld [vmem:[%s5 + $0x70] sm:$0xf]
    %v436 = vld [vmem:[%s5 + $0x8c] sm:$0xf]
    %v437 = vld [vmem:[%s5 + $0xa8] sm:$0xf]
    %v438 = vld [vmem:[%s5 + $0xc4] sm:$0xf]
    %v439 = vld [vmem:[%s5 + $0xe0] sm:$0xf]
    %v440 = vld [vmem:[%s5 + $0xfc] sm:$0xf]
    %v441 = vld [vmem:[%s5 + $0x118] sm:$0xf]
    %v442 = vld [vmem:[%s5 + $0x134] sm:$0xf]
    %v443 = vld [vmem:[%s5 + $0x150] sm:$0xf]
    %v444 = vld [vmem:[%s5 + $0x16c] sm:$0xf]
    %v445 = vld [vmem:[%s5 + $0x188] sm:$0xf]
    %v446 = vld [vmem:[%s5 + $0x1a4] sm:$0xf]
    %v447 = vld [vmem:[%s5 + $0x1c0] sm:$0xf]
    %v448 = vld [vmem:[%s5 + $0x1dc] sm:$0xf]
    %v449 = vld [vmem:[%s5 + $0x1f8] sm:$0xf]
    %v450 = vld [vmem:[%s5 + $0x214] sm:$0xf]
    %v451 = vld [vmem:[%s5 + $0x230] sm:$0xf]
    %v452 = vld [vmem:[%s5 + $0x24c] sm:$0xf]
    %v453 = vld [vmem:[%s5 + $0x268] sm:$0xf]
    %v454 = vld [vmem:[%s5 + $0x284] sm:$0xf]
    %v455 = vld [vmem:[%s5 + $0x2a0] sm:$0xf]
    %v456 = vld [vmem:[%s5 + $0x2bc] sm:$0xf]
    %v457 = vld [vmem:[%s5 + $0x2d8] sm:$0xf]
    %v458 = vld [vmem:[%s5 + $0x2f4] sm:$0xf]
    %v459 = vld [vmem:[%s5 + $0x310] sm:$0xf]
    %v460 = vld [vmem:[%s5 + $0x32c] sm:$0xf]
    %v461 = vld [vmem:[%s5 + $0x348] sm:$0xf]
    %v462 = vld [vmem:[%s5 + $0x364] sm:$0xf]
    %v463 = vld [vmem:[%s6] sm:$0x1]
    %v465 = vlaneseq
    %v466 = vshrl.u32 %v465, 7
    %v467 = vsub.s32 0, %v466
    %v468 = vrot.slane %v463, %v467
    %v502 = vunpack.c.l.b16 %v431
    %v503 = vunpack.c.l.b16 %v432
    %v504 = vunpack.c.l.b16 %v433
    %v505 = vunpack.c.l.b16 %v434
    %v506 = vunpack.c.l.b16 %v435
    %v507 = vunpack.c.l.b16 %v436
    %v508 = vunpack.c.l.b16 %v437
    %v509 = vunpack.c.l.b16 %v438
    %v510 = vunpack.c.l.b16 %v439
    %v511 = vunpack.c.l.b16 %v440
    %v512 = vunpack.c.l.b16 %v441
    %v513 = vunpack.c.l.b16 %v442
    %v514 = vunpack.c.l.b16 %v443
    %v515 = vunpack.c.l.b16 %v444
    %v516 = vunpack.c.l.b16 %v445
    %v517 = vunpack.c.l.b16 %v446
    %v518 = vunpack.c.l.b16 %v447
    %v519 = vunpack.c.l.b16 %v448
    %v520 = vunpack.c.l.b16 %v449
    %v521 = vunpack.c.l.b16 %v450
    %v522 = vunpack.c.l.b16 %v451
    %v523 = vunpack.c.l.b16 %v452
    %v524 = vunpack.c.l.b16 %v453
    %v525 = vunpack.c.l.b16 %v454
    %v526 = vunpack.c.l.b16 %v455
    %v527 = vunpack.c.l.b16 %v456
    %v528 = vunpack.c.l.b16 %v457
    %v529 = vunpack.c.l.b16 %v458
    %v530 = vunpack.c.l.b16 %v459
    %v531 = vunpack.c.l.b16 %v460
    %v532 = vunpack.c.l.b16 %v461
    %v533 = vunpack.c.l.b16 %v462
    %v534 = vpack.c.b16 %v503, %v502
    %v535 = vpack.c.b16 %v505, %v504
    %v536 = vpack.c.b16 %v507, %v506
    %v537 = vpack.c.b16 %v509, %v508
    %v538 = vpack.c.b16 %v511, %v510
    %v539 = vpack.c.b16 %v513, %v512
    %v540 = vpack.c.b16 %v515, %v514
    %v541 = vpack.c.b16 %v517, %v516
    %v542 = vpack.c.b16 %v519, %v518
    %v543 = vpack.c.b16 %v521, %v520
    %v544 = vpack.c.b16 %v523, %v522
    %v545 = vpack.c.b16 %v525, %v524
    %v546 = vpack.c.b16 %v527, %v526
    %v547 = vpack.c.b16 %v529, %v528
    %v548 = vpack.c.b16 %v531, %v530
    %v549 = vpack.c.b16 %v533, %v532
    %566 = vmatprep.subr.bf16.mxu0 0
    %567 = vmatpush1.bf16.msra.mxu0 %v534
    %568 = vmatprep.subr.bf16.mxu0 0
    %569 = vmatpush1.bf16.msra.mxu0 %v535
    %570 = vmatprep.subr.bf16.mxu0 0
    %571 = vmatpush1.bf16.msra.mxu0 %v536
    %572 = vmatprep.subr.bf16.mxu0 0
    %573 = vmatpush1.bf16.msra.mxu0 %v537
    %574 = vmatprep.subr.bf16.mxu0 0
    %575 = vmatpush1.bf16.msra.mxu0 %v538
    %576 = vmatprep.subr.bf16.mxu0 0
    %577 = vmatpush1.bf16.msra.mxu0 %v539
    %578 = vmatprep.subr.bf16.mxu0 0
    %579 = vmatpush1.bf16.msra.mxu0 %v540
    %580 = vmatprep.subr.bf16.mxu0 0
    %581 = vmatpush1.bf16.msra.mxu0 %v541
    %582 = vmatprep.subr.bf16.mxu0 0
    %583 = vmatpush1.bf16.msra.mxu0 %v542
    %584 = vmatprep.subr.bf16.mxu0 0
    %585 = vmatpush1.bf16.msra.mxu0 %v543
    %586 = vmatprep.subr.bf16.mxu0 0
    %587 = vmatpush1.bf16.msra.mxu0 %v544
    %588 = vmatprep.subr.bf16.mxu0 0
    %589 = vmatpush1.bf16.msra.mxu0 %v545
    %590 = vmatprep.subr.bf16.mxu0 0
    %591 = vmatpush1.bf16.msra.mxu0 %v546
    %592 = vmatprep.subr.bf16.mxu0 0
    %593 = vmatpush1.bf16.msra.mxu0 %v547
    %594 = vmatprep.subr.bf16.mxu0 0
    %595 = vmatpush1.bf16.msra.mxu0 %v548
    %596 = vmatprep.subr.bf16.mxu0 0
    %597 = vmatpush1.bf16.msra.mxu0 %v549
    %598 = vmatprep.mubr.bf16.mxu0 %v430
    %599 = vmatmul.mubr.bf16.gmra.mrb[0].mxu0 %v429
    %v600 = vpop.f32.mrb[0].mxu0
    %v601 = vadd.f32 %v468, %v600
    %v602 = vpop.f32.mrb[0].mxu0
    %v603 = vpop.f32.mrb[0].mxu0
    %v604 = vpop.f32.mrb[0].mxu0
    %605 = vdwg.mxu0
    %v606 = vtanh.pop %v601
    %607 = vst [vmem:[#allocation2] sm:$0xff] %v606
    %v608 = vld [vmem:[%s5 + $0x4] sm:$0xf]
    %v609 = vld [vmem:[%s5 + $0x20] sm:$0xf]
    %v610 = vld [vmem:[%s5 + $0x3c] sm:$0xf]
    %v611 = vld [vmem:[%s5 + $0x58] sm:$0xf]
    %v612 = vld [vmem:[%s5 + $0x74] sm:$0xf]
    %v613 = vld [vmem:[%s5 + $0x90] sm:$0xf]
    %v614 = vld [vmem:[%s5 + $0xac] sm:$0xf]
    %v615 = vld [vmem:[%s5 + $0xc8] sm:$0xf]
    %v616 = vld [vmem:[%s5 + $0xe4] sm:$0xf]
    %v617 = vld [vmem:[%s5 + $0x100] sm:$0xf]
    %v618 = vld [vmem:[%s5 + $0x11c] sm:$0xf]
    %v619 = vld [vmem:[%s5 + $0x138] sm:$0xf]
    %v620 = vld [vmem:[%s5 + $0x154] sm:$0xf]
    %v621 = vld [vmem:[%s5 + $0x170] sm:$0xf]
    %v622 = vld [vmem:[%s5 + $0x18c] sm:$0xf]
    %v623 = vld [vmem:[%s5 + $0x1a8] sm:$0xf]
    %v624 = vld [vmem:[%s5 + $0x1c4] sm:$0xf]
    %v625 = vld [vmem:[%s5 + $0x1e0] sm:$0xf]
    %v626 = vld [vmem:[%s5 + $0x1fc] sm:$0xf]
    %v627 = vld [vmem:[%s5 + $0x218] sm:$0xf]
    %v628 = vld [vmem:[%s5 + $0x234] sm:$0xf]
    %v629 = vld [vmem:[%s5 + $0x250] sm:$0xf]
    %v630 = vld [vmem:[%s5 + $0x26c] sm:$0xf]
    %v631 = vld [vmem:[%s5 + $0x288] sm:$0xf]
    %v632 = vld [vmem:[%s5 + $0x2a4] sm:$0xf]
    %v633 = vld [vmem:[%s5 + $0x2c0] sm:$0xf]
    %v634 = vld [vmem:[%s5 + $0x2dc] sm:$0xf]
    %v635 = vld [vmem:[%s5 + $0x2f8] sm:$0xf]
    %v636 = vld [vmem:[%s5 + $0x314] sm:$0xf]
    %v637 = vld [vmem:[%s5 + $0x330] sm:$0xf]
    %v638 = vld [vmem:[%s5 + $0x34c] sm:$0xf]
    %v639 = vld [vmem:[%s5 + $0x368] sm:$0xf]
    %v640 = vld [vmem:[%s6 + $0x1] sm:$0x1]
    %v642 = vlaneseq
    %v643 = vshrl.u32 %v642, 7
    %v644 = vsub.s32 0, %v643
    %v645 = vrot.slane %v640, %v644
    %v679 = vunpack.c.l.b16 %v608
    %v680 = vunpack.c.l.b16 %v609
    %v681 = vunpack.c.l.b16 %v610
    %v682 = vunpack.c.l.b16 %v611
    %v683 = vunpack.c.l.b16 %v612
    %v684 = vunpack.c.l.b16 %v613
    %v685 = vunpack.c.l.b16 %v614
    %v686 = vunpack.c.l.b16 %v615
    %v687 = vunpack.c.l.b16 %v616
    %v688 = vunpack.c.l.b16 %v617
    %v689 = vunpack.c.l.b16 %v618
    %v690 = vunpack.c.l.b16 %v619
    %v691 = vunpack.c.l.b16 %v620
    %v692 = vunpack.c.l.b16 %v621
    %v693 = vunpack.c.l.b16 %v622
    %v694 = vunpack.c.l.b16 %v623
    %v695 = vunpack.c.l.b16 %v624
    %v696 = vunpack.c.l.b16 %v625
    %v697 = vunpack.c.l.b16 %v626
    %v698 = vunpack.c.l.b16 %v627
    %v699 = vunpack.c.l.b16 %v628
    %v700 = vunpack.c.l.b16 %v629
    %v701 = vunpack.c.l.b16 %v630
    %v702 = vunpack.c.l.b16 %v631
    %v703 = vunpack.c.l.b16 %v632
    %v704 = vunpack.c.l.b16 %v633
    %v705 = vunpack.c.l.b16 %v634
    %v706 = vunpack.c.l.b16 %v635
    %v707 = vunpack.c.l.b16 %v636
    %v708 = vunpack.c.l.b16 %v637
    %v709 = vunpack.c.l.b16 %v638
    %v710 = vunpack.c.l.b16 %v639
    %v711 = vpack.c.b16 %v680, %v679
    %v712 = vpack.c.b16 %v682, %v681
    %v713 = vpack.c.b16 %v684, %v683
    %v714 = vpack.c.b16 %v686, %v685
    %v715 = vpack.c.b16 %v688, %v687
    %v716 = vpack.c.b16 %v690, %v689
    %v717 = vpack.c.b16 %v692, %v691
    %v718 = vpack.c.b16 %v694, %v693
    %v719 = vpack.c.b16 %v696, %v695
    %v720 = vpack.c.b16 %v698, %v697
    %v721 = vpack.c.b16 %v700, %v699
    %v722 = vpack.c.b16 %v702, %v701
    %v723 = vpack.c.b16 %v704, %v703
    %v724 = vpack.c.b16 %v706, %v705
    %v725 = vpack.c.b16 %v708, %v707
    %v726 = vpack.c.b16 %v710, %v709
    %743 = vmatprep.subr.bf16.mxu0 0
    %744 = vmatpush1.bf16.msra.mxu0 %v711
    %745 = vmatprep.subr.bf16.mxu0 0
    %746 = vmatpush1.bf16.msra.mxu0 %v712
    %747 = vmatprep.subr.bf16.mxu0 0
    %748 = vmatpush1.bf16.msra.mxu0 %v713
    %749 = vmatprep.subr.bf16.mxu0 0
    %750 = vmatpush1.bf16.msra.mxu0 %v714
    %751 = vmatprep.subr.bf16.mxu0 0
    %752 = vmatpush1.bf16.msra.mxu0 %v715
    %753 = vmatprep.subr.bf16.mxu0 0
    %754 = vmatpush1.bf16.msra.mxu0 %v716
    %755 = vmatprep.subr.bf16.mxu0 0
    %756 = vmatpush1.bf16.msra.mxu0 %v717
    %757 = vmatprep.subr.bf16.mxu0 0
    %758 = vmatpush1.bf16.msra.mxu0 %v718
    %759 = vmatprep.subr.bf16.mxu0 0
    %760 = vmatpush1.bf16.msra.mxu0 %v719
    %761 = vmatprep.subr.bf16.mxu0 0
    %762 = vmatpush1.bf16.msra.mxu0 %v720
    %763 = vmatprep.subr.bf16.mxu0 0
    %764 = vmatpush1.bf16.msra.mxu0 %v721
    %765 = vmatprep.subr.bf16.mxu0 0
    %766 = vmatpush1.bf16.msra.mxu0 %v722
    %767 = vmatprep.subr.bf16.mxu0 0
    %768 = vmatpush1.bf16.msra.mxu0 %v723
    %769 = vmatprep.subr.bf16.mxu0 0
    %770 = vmatpush1.bf16.msra.mxu0 %v724
    %771 = vmatprep.subr.bf16.mxu0 0
    %772 = vmatpush1.bf16.msra.mxu0 %v725
    %773 = vmatprep.subr.bf16.mxu0 0
    %774 = vmatpush1.bf16.msra.mxu0 %v726
    %775 = vmatprep.mubr.bf16.mxu0 %v430
    %776 = vmatmul.mubr.bf16.gmra.mrb[0].mxu0 %v429
    %v777 = vpop.f32.mrb[0].mxu0
    %v778 = vadd.f32 %v645, %v777
    %v779 = vpop.f32.mrb[0].mxu0
    %v780 = vpop.f32.mrb[0].mxu0
    %v781 = vpop.f32.mrb[0].mxu0
    %782 = vdwg.mxu0
    %v783 = vtanh.pop %v778
    %784 = vst [vmem:[#allocation2 + $0x8] sm:$0xff] %v783
    %v785 = vld [vmem:[%s5 + $0x8] sm:$0xf]
    %v786 = vld [vmem:[%s5 + $0x24] sm:$0xf]
    %v787 = vld [vmem:[%s5 + $0x40] sm:$0xf]
    %v788 = vld [vmem:[%s5 + $0x5c] sm:$0xf]
    %v789 = vld [vmem:[%s5 + $0x78] sm:$0xf]
    %v790 = vld [vmem:[%s5 + $0x94] sm:$0xf]
    %v791 = vld [vmem:[%s5 + $0xb0] sm:$0xf]
    %v792 = vld [vmem:[%s5 + $0xcc] sm:$0xf]
    %v793 = vld [vmem:[%s5 + $0xe8] sm:$0xf]
    %v794 = vld [vmem:[%s5 + $0x104] sm:$0xf]
    %v795 = vld [vmem:[%s5 + $0x120] sm:$0xf]
    %v796 = vld [vmem:[%s5 + $0x13c] sm:$0xf]
    %v797 = vld [vmem:[%s5 + $0x158] sm:$0xf]
    %v798 = vld [vmem:[%s5 + $0x174] sm:$0xf]
    %v799 = vld [vmem:[%s5 + $0x190] sm:$0xf]
    %v800 = vld [vmem:[%s5 + $0x1ac] sm:$0xf]
    %v801 = vld [vmem:[%s5 + $0x1c8] sm:$0xf]
    %v802 = vld [vmem:[%s5 + $0x1e4] sm:$0xf]
    %v803 = vld [vmem:[%s5 + $0x200] sm:$0xf]
    %v804 = vld [vmem:[%s5 + $0x21c] sm:$0xf]
    %v805 = vld [vmem:[%s5 + $0x238] sm:$0xf]
    %v806 = vld [vmem:[%s5 + $0x254] sm:$0xf]
    %v807 = vld [vmem:[%s5 + $0x270] sm:$0xf]
    %v808 = vld [vmem:[%s5 + $0x28c] sm:$0xf]
    %v809 = vld [vmem:[%s5 + $0x2a8] sm:$0xf]
    %v810 = vld [vmem:[%s5 + $0x2c4] sm:$0xf]
    %v811 = vld [vmem:[%s5 + $0x2e0] sm:$0xf]
    %v812 = vld [vmem:[%s5 + $0x2fc] sm:$0xf]
    %v813 = vld [vmem:[%s5 + $0x318] sm:$0xf]
    %v814 = vld [vmem:[%s5 + $0x334] sm:$0xf]
    %v815 = vld [vmem:[%s5 + $0x350] sm:$0xf]
    %v816 = vld [vmem:[%s5 + $0x36c] sm:$0xf]
    %v817 = vld [vmem:[%s6 + $0x2] sm:$0x1]
    %v819 = vlaneseq
    %v820 = vshrl.u32 %v819, 7
    %v821 = vsub.s32 0, %v820
    %v822 = vrot.slane %v817, %v821
    %v856 = vunpack.c.l.b16 %v785
    %v857 = vunpack.c.l.b16 %v786
    %v858 = vunpack.c.l.b16 %v787
    %v859 = vunpack.c.l.b16 %v788
    %v860 = vunpack.c.l.b16 %v789
    %v861 = vunpack.c.l.b16 %v790
    %v862 = vunpack.c.l.b16 %v791
    %v863 = vunpack.c.l.b16 %v792
    %v864 = vunpack.c.l.b16 %v793
    %v865 = vunpack.c.l.b16 %v794
    %v866 = vunpack.c.l.b16 %v795
    %v867 = vunpack.c.l.b16 %v796
    %v868 = vunpack.c.l.b16 %v797
    %v869 = vunpack.c.l.b16 %v798
    %v870 = vunpack.c.l.b16 %v799
    %v871 = vunpack.c.l.b16 %v800
    %v872 = vunpack.c.l.b16 %v801
    %v873 = vunpack.c.l.b16 %v802
    %v874 = vunpack.c.l.b16 %v803
    %v875 = vunpack.c.l.b16 %v804
    %v876 = vunpack.c.l.b16 %v805
    %v877 = vunpack.c.l.b16 %v806
    %v878 = vunpack.c.l.b16 %v807
    %v879 = vunpack.c.l.b16 %v808
    %v880 = vunpack.c.l.b16 %v809
    %v881 = vunpack.c.l.b16 %v810
    %v882 = vunpack.c.l.b16 %v811
    %v883 = vunpack.c.l.b16 %v812
    %v884 = vunpack.c.l.b16 %v813
    %v885 = vunpack.c.l.b16 %v814
    %v886 = vunpack.c.l.b16 %v815
    %v887 = vunpack.c.l.b16 %v816
    %v888 = vpack.c.b16 %v857, %v856
    %v889 = vpack.c.b16 %v859, %v858
    %v890 = vpack.c.b16 %v861, %v860
    %v891 = vpack.c.b16 %v863, %v862
    %v892 = vpack.c.b16 %v865, %v864
    %v893 = vpack.c.b16 %v867, %v866
    %v894 = vpack.c.b16 %v869, %v868
    %v895 = vpack.c.b16 %v871, %v870
    %v896 = vpack.c.b16 %v873, %v872
    %v897 = vpack.c.b16 %v875, %v874
    %v898 = vpack.c.b16 %v877, %v876
    %v899 = vpack.c.b16 %v879, %v878
    %v900 = vpack.c.b16 %v881, %v880
    %v901 = vpack.c.b16 %v883, %v882
    %v902 = vpack.c.b16 %v885, %v884
    %v903 = vpack.c.b16 %v887, %v886
    %920 = vmatprep.subr.bf16.mxu0 0
    %921 = vmatpush1.bf16.msra.mxu0 %v888
    %922 = vmatprep.subr.bf16.mxu0 0
    %923 = vmatpush1.bf16.msra.mxu0 %v889
    %924 = vmatprep.subr.bf16.mxu0 0
    %925 = vmatpush1.bf16.msra.mxu0 %v890
    %926 = vmatprep.subr.bf16.mxu0 0
    %927 = vmatpush1.bf16.msra.mxu0 %v891
    %928 = vmatprep.subr.bf16.mxu0 0
    %929 = vmatpush1.bf16.msra.mxu0 %v892
    %930 = vmatprep.subr.bf16.mxu0 0
    %931 = vmatpush1.bf16.msra.mxu0 %v893
    %932 = vmatprep.subr.bf16.mxu0 0
    %933 = vmatpush1.bf16.msra.mxu0 %v894
    %934 = vmatprep.subr.bf16.mxu0 0
    %935 = vmatpush1.bf16.msra.mxu0 %v895
    %936 = vmatprep.subr.bf16.mxu0 0
    %937 = vmatpush1.bf16.msra.mxu0 %v896
    %938 = vmatprep.subr.bf16.mxu0 0
    %939 = vmatpush1.bf16.msra.mxu0 %v897
    %940 = vmatprep.subr.bf16.mxu0 0
    %941 = vmatpush1.bf16.msra.mxu0 %v898
    %942 = vmatprep.subr.bf16.mxu0 0
    %943 = vmatpush1.bf16.msra.mxu0 %v899
    %944 = vmatprep.subr.bf16.mxu0 0
    %945 = vmatpush1.bf16.msra.mxu0 %v900
    %946 = vmatprep.subr.bf16.mxu0 0
    %947 = vmatpush1.bf16.msra.mxu0 %v901
    %948 = vmatprep.subr.bf16.mxu0 0
    %949 = vmatpush1.bf16.msra.mxu0 %v902
    %950 = vmatprep.subr.bf16.mxu0 0
    %951 = vmatpush1.bf16.msra.mxu0 %v903
    %952 = vmatprep.mubr.bf16.mxu0 %v430
    %953 = vmatmul.mubr.bf16.gmra.mrb[0].mxu0 %v429
    %v954 = vpop.f32.mrb[0].mxu0
    %v955 = vadd.f32 %v822, %v954
    %v956 = vpop.f32.mrb[0].mxu0
    %v957 = vpop.f32.mrb[0].mxu0
    %v958 = vpop.f32.mrb[0].mxu0
    %959 = vdwg.mxu0
    %v960 = vtanh.pop %v955
    %961 = vst [vmem:[#allocation2 + $0x10] sm:$0xff] %v960
    %v962 = vld [vmem:[%s5 + $0xc] sm:$0xf]
    %v963 = vld [vmem:[%s5 + $0x28] sm:$0xf]
    %v964 = vld [vmem:[%s5 + $0x44] sm:$0xf]
    %v965 = vld [vmem:[%s5 + $0x60] sm:$0xf]
    %v966 = vld [vmem:[%s5 + $0x7c] sm:$0xf]
    %v967 = vld [vmem:[%s5 + $0x98] sm:$0xf]
    %v968 = vld [vmem:[%s5 + $0xb4] sm:$0xf]
    %v969 = vld [vmem:[%s5 + $0xd0] sm:$0xf]
    %v970 = vld [vmem:[%s5 + $0xec] sm:$0xf]
    %v971 = vld [vmem:[%s5 + $0x108] sm:$0xf]
    %v972 = vld [vmem:[%s5 + $0x124] sm:$0xf]
    %v973 = vld [vmem:[%s5 + $0x140] sm:$0xf]
    %v974 = vld [vmem:[%s5 + $0x15c] sm:$0xf]
    %v975 = vld [vmem:[%s5 + $0x178] sm:$0xf]
    %v976 = vld [vmem:[%s5 + $0x194] sm:$0xf]
    %v977 = vld [vmem:[%s5 + $0x1b0] sm:$0xf]
    %v978 = vld [vmem:[%s5 + $0x1cc] sm:$0xf]
    %v979 = vld [vmem:[%s5 + $0x1e8] sm:$0xf]
    %v980 = vld [vmem:[%s5 + $0x204] sm:$0xf]
    %v981 = vld [vmem:[%s5 + $0x220] sm:$0xf]
    %v982 = vld [vmem:[%s5 + $0x23c] sm:$0xf]
    %v983 = vld [vmem:[%s5 + $0x258] sm:$0xf]
    %v984 = vld [vmem:[%s5 + $0x274] sm:$0xf]
    %v985 = vld [vmem:[%s5 + $0x290] sm:$0xf]
    %v986 = vld [vmem:[%s5 + $0x2ac] sm:$0xf]
    %v987 = vld [vmem:[%s5 + $0x2c8] sm:$0xf]
    %v988 = vld [vmem:[%s5 + $0x2e4] sm:$0xf]
    %v989 = vld [vmem:[%s5 + $0x300] sm:$0xf]
    %v990 = vld [vmem:[%s5 + $0x31c] sm:$0xf]
    %v991 = vld [vmem:[%s5 + $0x338] sm:$0xf]
    %v992 = vld [vmem:[%s5 + $0x354] sm:$0xf]
    %v993 = vld [vmem:[%s5 + $0x370] sm:$0xf]
    %v994 = vld [vmem:[%s6 + $0x3] sm:$0x1]
    %v996 = vlaneseq
    %v997 = vshrl.u32 %v996, 7
    %v998 = vsub.s32 0, %v997
    %v999 = vrot.slane %v994, %v998
    %v1033 = vunpack.c.l.b16 %v962
    %v1034 = vunpack.c.l.b16 %v963
    %v1035 = vunpack.c.l.b16 %v964
    %v1036 = vunpack.c.l.b16 %v965
    %v1037 = vunpack.c.l.b16 %v966
    %v1038 = vunpack.c.l.b16 %v967
    %v1039 = vunpack.c.l.b16 %v968
    %v1040 = vunpack.c.l.b16 %v969
    %v1041 = vunpack.c.l.b16 %v970
    %v1042 = vunpack.c.l.b16 %v971
    %v1043 = vunpack.c.l.b16 %v972
    %v1044 = vunpack.c.l.b16 %v973
    %v1045 = vunpack.c.l.b16 %v974
    %v1046 = vunpack.c.l.b16 %v975
    %v1047 = vunpack.c.l.b16 %v976
    %v1048 = vunpack.c.l.b16 %v977
    %v1049 = vunpack.c.l.b16 %v978
    %v1050 = vunpack.c.l.b16 %v979
    %v1051 = vunpack.c.l.b16 %v980
    %v1052 = vunpack.c.l.b16 %v981
    %v1053 = vunpack.c.l.b16 %v982
    %v1054 = vunpack.c.l.b16 %v983
    %v1055 = vunpack.c.l.b16 %v984
    %v1056 = vunpack.c.l.b16 %v985
    %v1057 = vunpack.c.l.b16 %v986
    %v1058 = vunpack.c.l.b16 %v987
    %v1059 = vunpack.c.l.b16 %v988
    %v1060 = vunpack.c.l.b16 %v989
    %v1061 = vunpack.c.l.b16 %v990
    %v1062 = vunpack.c.l.b16 %v991
    %v1063 = vunpack.c.l.b16 %v992
    %v1064 = vunpack.c.l.b16 %v993
    %v1065 = vpack.c.b16 %v1034, %v1033
    %v1066 = vpack.c.b16 %v1036, %v1035
    %v1067 = vpack.c.b16 %v1038, %v1037
    %v1068 = vpack.c.b16 %v1040, %v1039
    %v1069 = vpack.c.b16 %v1042, %v1041
    %v1070 = vpack.c.b16 %v1044, %v1043
    %v1071 = vpack.c.b16 %v1046, %v1045
    %v1072 = vpack.c.b16 %v1048, %v1047
    %v1073 = vpack.c.b16 %v1050, %v1049
    %v1074 = vpack.c.b16 %v1052, %v1051
    %v1075 = vpack.c.b16 %v1054, %v1053
    %v1076 = vpack.c.b16 %v1056, %v1055
    %v1077 = vpack.c.b16 %v1058, %v1057
    %v1078 = vpack.c.b16 %v1060, %v1059
    %v1079 = vpack.c.b16 %v1062, %v1061
    %v1080 = vpack.c.b16 %v1064, %v1063
    %1097 = vmatprep.subr.bf16.mxu0 0
    %1098 = vmatpush1.bf16.msra.mxu0 %v1065
    %1099 = vmatprep.subr.bf16.mxu0 0
    %1100 = vmatpush1.bf16.msra.mxu0 %v1066
    %1101 = vmatprep.subr.bf16.mxu0 0
    %1102 = vmatpush1.bf16.msra.mxu0 %v1067
    %1103 = vmatprep.subr.bf16.mxu0 0
    %1104 = vmatpush1.bf16.msra.mxu0 %v1068
    %1105 = vmatprep.subr.bf16.mxu0 0
    %1106 = vmatpush1.bf16.msra.mxu0 %v1069
    %1107 = vmatprep.subr.bf16.mxu0 0
    %1108 = vmatpush1.bf16.msra.mxu0 %v1070
    %1109 = vmatprep.subr.bf16.mxu0 0
    %1110 = vmatpush1.bf16.msra.mxu0 %v1071
    %1111 = vmatprep.subr.bf16.mxu0 0
    %1112 = vmatpush1.bf16.msra.mxu0 %v1072
    %1113 = vmatprep.subr.bf16.mxu0 0
    %1114 = vmatpush1.bf16.msra.mxu0 %v1073
    %1115 = vmatprep.subr.bf16.mxu0 0
    %1116 = vmatpush1.bf16.msra.mxu0 %v1074
    %1117 = vmatprep.subr.bf16.mxu0 0
    %1118 = vmatpush1.bf16.msra.mxu0 %v1075
    %1119 = vmatprep.subr.bf16.mxu0 0
    %1120 = vmatpush1.bf16.msra.mxu0 %v1076
    %1121 = vmatprep.subr.bf16.mxu0 0
    %1122 = vmatpush1.bf16.msra.mxu0 %v1077
    %1123 = vmatprep.subr.bf16.mxu0 0
    %1124 = vmatpush1.bf16.msra.mxu0 %v1078
    %1125 = vmatprep.subr.bf16.mxu0 0
    %1126 = vmatpush1.bf16.msra.mxu0 %v1079
    %1127 = vmatprep.subr.bf16.mxu0 0
    %1128 = vmatpush1.bf16.msra.mxu0 %v1080
    %1129 = vmatprep.mubr.bf16.mxu0 %v430
    %1130 = vmatmul.mubr.bf16.gmra.mrb[0].mxu0 %v429
    %v1131 = vpop.f32.mrb[0].mxu0
    %v1132 = vadd.f32 %v999, %v1131
    %v1133 = vpop.f32.mrb[0].mxu0
    %v1134 = vpop.f32.mrb[0].mxu0
    %v1135 = vpop.f32.mrb[0].mxu0
    %1136 = vdwg.mxu0
    %v1137 = vtanh.pop %v1132
    %1138 = vst [vmem:[#allocation2 + $0x18] sm:$0xff] %v1137
    %v1139 = vld [vmem:[%s5 + $0x10] sm:$0xf]
    %v1140 = vld [vmem:[%s5 + $0x2c] sm:$0xf]
    %v1141 = vld [vmem:[%s5 + $0x48] sm:$0xf]
    %v1142 = vld [vmem:[%s5 + $0x64] sm:$0xf]
    %v1143 = vld [vmem:[%s5 + $0x80] sm:$0xf]
    %v1144 = vld [vmem:[%s5 + $0x9c] sm:$0xf]
    %v1145 = vld [vmem:[%s5 + $0xb8] sm:$0xf]
    %v1146 = vld [vmem:[%s5 + $0xd4] sm:$0xf]
    %v1147 = vld [vmem:[%s5 + $0xf0] sm:$0xf]
    %v1148 = vld [vmem:[%s5 + $0x10c] sm:$0xf]
    %v1149 = vld [vmem:[%s5 + $0x128] sm:$0xf]
    %v1150 = vld [vmem:[%s5 + $0x144] sm:$0xf]
    %v1151 = vld [vmem:[%s5 + $0x160] sm:$0xf]
    %v1152 = vld [vmem:[%s5 + $0x17c] sm:$0xf]
    %v1153 = vld [vmem:[%s5 + $0x198] sm:$0xf]
    %v1154 = vld [vmem:[%s5 + $0x1b4] sm:$0xf]
    %v1155 = vld [vmem:[%s5 + $0x1d0] sm:$0xf]
    %v1156 = vld [vmem:[%s5 + $0x1ec] sm:$0xf]
    %v1157 = vld [vmem:[%s5 + $0x208] sm:$0xf]
    %v1158 = vld [vmem:[%s5 + $0x224] sm:$0xf]
    %v1159 = vld [vmem:[%s5 + $0x240] sm:$0xf]
    %v1160 = vld [vmem:[%s5 + $0x25c] sm:$0xf]
    %v1161 = vld [vmem:[%s5 + $0x278] sm:$0xf]
    %v1162 = vld [vmem:[%s5 + $0x294] sm:$0xf]
    %v1163 = vld [vmem:[%s5 + $0x2b0] sm:$0xf]
    %v1164 = vld [vmem:[%s5 + $0x2cc] sm:$0xf]
    %v1165 = vld [vmem:[%s5 + $0x2e8] sm:$0xf]
    %v1166 = vld [vmem:[%s5 + $0x304] sm:$0xf]
    %v1167 = vld [vmem:[%s5 + $0x320] sm:$0xf]
    %v1168 = vld [vmem:[%s5 + $0x33c] sm:$0xf]
    %v1169 = vld [vmem:[%s5 + $0x358] sm:$0xf]
    %v1170 = vld [vmem:[%s5 + $0x374] sm:$0xf]
    %v1171 = vld [vmem:[%s6 + $0x4] sm:$0x1]
    %v1173 = vlaneseq
    %v1174 = vshrl.u32 %v1173, 7
    %v1175 = vsub.s32 0, %v1174
    %v1176 = vrot.slane %v1171, %v1175
    %v1210 = vunpack.c.l.b16 %v1139
    %v1211 = vunpack.c.l.b16 %v1140
    %v1212 = vunpack.c.l.b16 %v1141
    %v1213 = vunpack.c.l.b16 %v1142
    %v1214 = vunpack.c.l.b16 %v1143
    %v1215 = vunpack.c.l.b16 %v1144
    %v1216 = vunpack.c.l.b16 %v1145
    %v1217 = vunpack.c.l.b16 %v1146
    %v1218 = vunpack.c.l.b16 %v1147
    %v1219 = vunpack.c.l.b16 %v1148
    %v1220 = vunpack.c.l.b16 %v1149
    %v1221 = vunpack.c.l.b16 %v1150
    %v1222 = vunpack.c.l.b16 %v1151
    %v1223 = vunpack.c.l.b16 %v1152
    %v1224 = vunpack.c.l.b16 %v1153
    %v1225 = vunpack.c.l.b16 %v1154
    %v1226 = vunpack.c.l.b16 %v1155
    %v1227 = vunpack.c.l.b16 %v1156
    %v1228 = vunpack.c.l.b16 %v1157
    %v1229 = vunpack.c.l.b16 %v1158
    %v1230 = vunpack.c.l.b16 %v1159
    %v1231 = vunpack.c.l.b16 %v1160
    %v1232 = vunpack.c.l.b16 %v1161
    %v1233 = vunpack.c.l.b16 %v1162
    %v1234 = vunpack.c.l.b16 %v1163
    %v1235 = vunpack.c.l.b16 %v1164
    %v1236 = vunpack.c.l.b16 %v1165
    %v1237 = vunpack.c.l.b16 %v1166
    %v1238 = vunpack.c.l.b16 %v1167
    %v1239 = vunpack.c.l.b16 %v1168
    %v1240 = vunpack.c.l.b16 %v1169
    %v1241 = vunpack.c.l.b16 %v1170
    %v1242 = vpack.c.b16 %v1211, %v1210
    %v1243 = vpack.c.b16 %v1213, %v1212
    %v1244 = vpack.c.b16 %v1215, %v1214
    %v1245 = vpack.c.b16 %v1217, %v1216
    %v1246 = vpack.c.b16 %v1219, %v1218
    %v1247 = vpack.c.b16 %v1221, %v1220
    %v1248 = vpack.c.b16 %v1223, %v1222
    %v1249 = vpack.c.b16 %v1225, %v1224
    %v1250 = vpack.c.b16 %v1227, %v1226
    %v1251 = vpack.c.b16 %v1229, %v1228
    %v1252 = vpack.c.b16 %v1231, %v1230
    %v1253 = vpack.c.b16 %v1233, %v1232
    %v1254 = vpack.c.b16 %v1235, %v1234
    %v1255 = vpack.c.b16 %v1237, %v1236
    %v1256 = vpack.c.b16 %v1239, %v1238
    %v1257 = vpack.c.b16 %v1241, %v1240
    %1274 = vmatprep.subr.bf16.mxu0 0
    %1275 = vmatpush1.bf16.msra.mxu0 %v1242
    %1276 = vmatprep.subr.bf16.mxu0 0
    %1277 = vmatpush1.bf16.msra.mxu0 %v1243
    %1278 = vmatprep.subr.bf16.mxu0 0
    %1279 = vmatpush1.bf16.msra.mxu0 %v1244
    %1280 = vmatprep.subr.bf16.mxu0 0
    %1281 = vmatpush1.bf16.msra.mxu0 %v1245
    %1282 = vmatprep.subr.bf16.mxu0 0
    %1283 = vmatpush1.bf16.msra.mxu0 %v1246
    %1284 = vmatprep.subr.bf16.mxu0 0
    %1285 = vmatpush1.bf16.msra.mxu0 %v1247
    %1286 = vmatprep.subr.bf16.mxu0 0
    %1287 = vmatpush1.bf16.msra.mxu0 %v1248
    %1288 = vmatprep.subr.bf16.mxu0 0
    %1289 = vmatpush1.bf16.msra.mxu0 %v1249
    %1290 = vmatprep.subr.bf16.mxu0 0
    %1291 = vmatpush1.bf16.msra.mxu0 %v1250
    %1292 = vmatprep.subr.bf16.mxu0 0
    %1293 = vmatpush1.bf16.msra.mxu0 %v1251
    %1294 = vmatprep.subr.bf16.mxu0 0
    %1295 = vmatpush1.bf16.msra.mxu0 %v1252
    %1296 = vmatprep.subr.bf16.mxu0 0
    %1297 = vmatpush1.bf16.msra.mxu0 %v1253
    %1298 = vmatprep.subr.bf16.mxu0 0
    %1299 = vmatpush1.bf16.msra.mxu0 %v1254
    %1300 = vmatprep.subr.bf16.mxu0 0
    %1301 = vmatpush1.bf16.msra.mxu0 %v1255
    %1302 = vmatprep.subr.bf16.mxu0 0
    %1303 = vmatpush1.bf16.msra.mxu0 %v1256
    %1304 = vmatprep.subr.bf16.mxu0 0
    %1305 = vmatpush1.bf16.msra.mxu0 %v1257
    %1306 = vmatprep.mubr.bf16.mxu0 %v430
    %1307 = vmatmul.mubr.bf16.gmra.mrb[0].mxu0 %v429
    %v1308 = vpop.f32.mrb[0].mxu0
    %v1309 = vadd.f32 %v1176, %v1308
    %v1310 = vpop.f32.mrb[0].mxu0
    %v1311 = vpop.f32.mrb[0].mxu0
    %v1312 = vpop.f32.mrb[0].mxu0
    %1313 = vdwg.mxu0
    %v1314 = vtanh.pop %v1309
    %1315 = vst [vmem:[#allocation2 + $0x20] sm:$0xff] %v1314
    %v1316 = vld [vmem:[%s5 + $0x14] sm:$0xf]
    %v1317 = vld [vmem:[%s5 + $0x30] sm:$0xf]
    %v1318 = vld [vmem:[%s5 + $0x4c] sm:$0xf]
    %v1319 = vld [vmem:[%s5 + $0x68] sm:$0xf]
    %v1320 = vld [vmem:[%s5 + $0x84] sm:$0xf]
    %v1321 = vld [vmem:[%s5 + $0xa0] sm:$0xf]
    %v1322 = vld [vmem:[%s5 + $0xbc] sm:$0xf]
    %v1323 = vld [vmem:[%s5 + $0xd8] sm:$0xf]
    %v1324 = vld [vmem:[%s5 + $0xf4] sm:$0xf]
    %v1325 = vld [vmem:[%s5 + $0x110] sm:$0xf]
    %v1326 = vld [vmem:[%s5 + $0x12c] sm:$0xf]
    %v1327 = vld [vmem:[%s5 + $0x148] sm:$0xf]
    %v1328 = vld [vmem:[%s5 + $0x164] sm:$0xf]
    %v1329 = vld [vmem:[%s5 + $0x180] sm:$0xf]
    %v1330 = vld [vmem:[%s5 + $0x19c] sm:$0xf]
    %v1331 = vld [vmem:[%s5 + $0x1b8] sm:$0xf]
    %v1332 = vld [vmem:[%s5 + $0x1d4] sm:$0xf]
    %v1333 = vld [vmem:[%s5 + $0x1f0] sm:$0xf]
    %v1334 = vld [vmem:[%s5 + $0x20c] sm:$0xf]
    %v1335 = vld [vmem:[%s5 + $0x228] sm:$0xf]
    %v1336 = vld [vmem:[%s5 + $0x244] sm:$0xf]
    %v1337 = vld [vmem:[%s5 + $0x260] sm:$0xf]
    %v1338 = vld [vmem:[%s5 + $0x27c] sm:$0xf]
    %v1339 = vld [vmem:[%s5 + $0x298] sm:$0xf]
    %v1340 = vld [vmem:[%s5 + $0x2b4] sm:$0xf]
    %v1341 = vld [vmem:[%s5 + $0x2d0] sm:$0xf]
    %v1342 = vld [vmem:[%s5 + $0x2ec] sm:$0xf]
    %v1343 = vld [vmem:[%s5 + $0x308] sm:$0xf]
    %v1344 = vld [vmem:[%s5 + $0x324] sm:$0xf]
    %v1345 = vld [vmem:[%s5 + $0x340] sm:$0xf]
    %v1346 = vld [vmem:[%s5 + $0x35c] sm:$0xf]
    %v1347 = vld [vmem:[%s5 + $0x378] sm:$0xf]
    %v1348 = vld [vmem:[%s6 + $0x5] sm:$0x1]
    %v1350 = vlaneseq
    %v1351 = vshrl.u32 %v1350, 7
    %v1352 = vsub.s32 0, %v1351
    %v1353 = vrot.slane %v1348, %v1352
    %v1387 = vunpack.c.l.b16 %v1316
    %v1388 = vunpack.c.l.b16 %v1317
    %v1389 = vunpack.c.l.b16 %v1318
    %v1390 = vunpack.c.l.b16 %v1319
    %v1391 = vunpack.c.l.b16 %v1320
    %v1392 = vunpack.c.l.b16 %v1321
    %v1393 = vunpack.c.l.b16 %v1322
    %v1394 = vunpack.c.l.b16 %v1323
    %v1395 = vunpack.c.l.b16 %v1324
    %v1396 = vunpack.c.l.b16 %v1325
    %v1397 = vunpack.c.l.b16 %v1326
    %v1398 = vunpack.c.l.b16 %v1327
    %v1399 = vunpack.c.l.b16 %v1328
    %v1400 = vunpack.c.l.b16 %v1329
    %v1401 = vunpack.c.l.b16 %v1330
    %v1402 = vunpack.c.l.b16 %v1331
    %v1403 = vunpack.c.l.b16 %v1332
    %v1404 = vunpack.c.l.b16 %v1333
    %v1405 = vunpack.c.l.b16 %v1334
    %v1406 = vunpack.c.l.b16 %v1335
    %v1407 = vunpack.c.l.b16 %v1336
    %v1408 = vunpack.c.l.b16 %v1337
    %v1409 = vunpack.c.l.b16 %v1338
    %v1410 = vunpack.c.l.b16 %v1339
    %v1411 = vunpack.c.l.b16 %v1340
    %v1412 = vunpack.c.l.b16 %v1341
    %v1413 = vunpack.c.l.b16 %v1342
    %v1414 = vunpack.c.l.b16 %v1343
    %v1415 = vunpack.c.l.b16 %v1344
    %v1416 = vunpack.c.l.b16 %v1345
    %v1417 = vunpack.c.l.b16 %v1346
    %v1418 = vunpack.c.l.b16 %v1347
    %v1419 = vpack.c.b16 %v1388, %v1387
    %v1420 = vpack.c.b16 %v1390, %v1389
    %v1421 = vpack.c.b16 %v1392, %v1391
    %v1422 = vpack.c.b16 %v1394, %v1393
    %v1423 = vpack.c.b16 %v1396, %v1395
    %v1424 = vpack.c.b16 %v1398, %v1397
    %v1425 = vpack.c.b16 %v1400, %v1399
    %v1426 = vpack.c.b16 %v1402, %v1401
    %v1427 = vpack.c.b16 %v1404, %v1403
    %v1428 = vpack.c.b16 %v1406, %v1405
    %v1429 = vpack.c.b16 %v1408, %v1407
    %v1430 = vpack.c.b16 %v1410, %v1409
    %v1431 = vpack.c.b16 %v1412, %v1411
    %v1432 = vpack.c.b16 %v1414, %v1413
    %v1433 = vpack.c.b16 %v1416, %v1415
    %v1434 = vpack.c.b16 %v1418, %v1417
    %1451 = vmatprep.subr.bf16.mxu0 0
    %1452 = vmatpush1.bf16.msra.mxu0 %v1419
    %1453 = vmatprep.subr.bf16.mxu0 0
    %1454 = vmatpush1.bf16.msra.mxu0 %v1420
    %1455 = vmatprep.subr.bf16.mxu0 0
    %1456 = vmatpush1.bf16.msra.mxu0 %v1421
    %1457 = vmatprep.subr.bf16.mxu0 0
    %1458 = vmatpush1.bf16.msra.mxu0 %v1422
    %1459 = vmatprep.subr.bf16.mxu0 0
    %1460 = vmatpush1.bf16.msra.mxu0 %v1423
    %1461 = vmatprep.subr.bf16.mxu0 0
    %1462 = vmatpush1.bf16.msra.mxu0 %v1424
    %1463 = vmatprep.subr.bf16.mxu0 0
    %1464 = vmatpush1.bf16.msra.mxu0 %v1425
    %1465 = vmatprep.subr.bf16.mxu0 0
    %1466 = vmatpush1.bf16.msra.mxu0 %v1426
    %1467 = vmatprep.subr.bf16.mxu0 0
    %1468 = vmatpush1.bf16.msra.mxu0 %v1427
    %1469 = vmatprep.subr.bf16.mxu0 0
    %1470 = vmatpush1.bf16.msra.mxu0 %v1428
    %1471 = vmatprep.subr.bf16.mxu0 0
    %1472 = vmatpush1.bf16.msra.mxu0 %v1429
    %1473 = vmatprep.subr.bf16.mxu0 0
    %1474 = vmatpush1.bf16.msra.mxu0 %v1430
    %1475 = vmatprep.subr.bf16.mxu0 0
    %1476 = vmatpush1.bf16.msra.mxu0 %v1431
    %1477 = vmatprep.subr.bf16.mxu0 0
    %1478 = vmatpush1.bf16.msra.mxu0 %v1432
    %1479 = vmatprep.subr.bf16.mxu0 0
    %1480 = vmatpush1.bf16.msra.mxu0 %v1433
    %1481 = vmatprep.subr.bf16.mxu0 0
    %1482 = vmatpush1.bf16.msra.mxu0 %v1434
    %1483 = vmatprep.mubr.bf16.mxu0 %v430
    %1484 = vmatmul.mubr.bf16.gmra.mrb[0].mxu0 %v429
    %v1485 = vpop.f32.mrb[0].mxu0
    %v1486 = vadd.f32 %v1353, %v1485
    %v1487 = vpop.f32.mrb[0].mxu0
    %v1488 = vpop.f32.mrb[0].mxu0
    %v1489 = vpop.f32.mrb[0].mxu0
    %1490 = vdwg.mxu0
    %v1491 = vtanh.pop %v1486
    %1492 = vst [vmem:[#allocation2 + $0x28] sm:$0xff] %v1491
    %v1493 = vld [vmem:[%s5 + $0x18] sm:$0xf]
    %v1494 = vld [vmem:[%s5 + $0x34] sm:$0xf]
    %v1495 = vld [vmem:[%s5 + $0x50] sm:$0xf]
    %v1496 = vld [vmem:[%s5 + $0x6c] sm:$0xf]
    %v1497 = vld [vmem:[%s5 + $0x88] sm:$0xf]
    %v1498 = vld [vmem:[%s5 + $0xa4] sm:$0xf]
    %v1499 = vld [vmem:[%s5 + $0xc0] sm:$0xf]
    %v1500 = vld [vmem:[%s5 + $0xdc] sm:$0xf]
    %v1501 = vld [vmem:[%s5 + $0xf8] sm:$0xf]
    %v1502 = vld [vmem:[%s5 + $0x114] sm:$0xf]
    %v1503 = vld [vmem:[%s5 + $0x130] sm:$0xf]
    %v1504 = vld [vmem:[%s5 + $0x14c] sm:$0xf]
    %v1505 = vld [vmem:[%s5 + $0x168] sm:$0xf]
    %v1506 = vld [vmem:[%s5 + $0x184] sm:$0xf]
    %v1507 = vld [vmem:[%s5 + $0x1a0] sm:$0xf]
    %v1508 = vld [vmem:[%s5 + $0x1bc] sm:$0xf]
    %v1509 = vld [vmem:[%s5 + $0x1d8] sm:$0xf]
    %v1510 = vld [vmem:[%s5 + $0x1f4] sm:$0xf]
    %v1511 = vld [vmem:[%s5 + $0x210] sm:$0xf]
    %v1512 = vld [vmem:[%s5 + $0x22c] sm:$0xf]
    %v1513 = vld [vmem:[%s5 + $0x248] sm:$0xf]
    %v1514 = vld [vmem:[%s5 + $0x264] sm:$0xf]
    %v1515 = vld [vmem:[%s5 + $0x280] sm:$0xf]
    %v1516 = vld [vmem:[%s5 + $0x29c] sm:$0xf]
    %v1517 = vld [vmem:[%s5 + $0x2b8] sm:$0xf]
    %v1518 = vld [vmem:[%s5 + $0x2d4] sm:$0xf]
    %v1519 = vld [vmem:[%s5 + $0x2f0] sm:$0xf]
    %v1520 = vld [vmem:[%s5 + $0x30c] sm:$0xf]
    %v1521 = vld [vmem:[%s5 + $0x328] sm:$0xf]
    %v1522 = vld [vmem:[%s5 + $0x344] sm:$0xf]
    %v1523 = vld [vmem:[%s5 + $0x360] sm:$0xf]
    %v1524 = vld [vmem:[%s5 + $0x37c] sm:$0xf]
    %v1525 = vld [vmem:[%s6 + $0x6] sm:$0x1]
    %v1527 = vlaneseq
    %v1528 = vshrl.u32 %v1527, 7
    %v1529 = vsub.s32 0, %v1528
    %v1530 = vrot.slane %v1525, %v1529
    %v1564 = vunpack.c.l.b16 %v1493
    %v1565 = vunpack.c.l.b16 %v1494
    %v1566 = vunpack.c.l.b16 %v1495
    %v1567 = vunpack.c.l.b16 %v1496
    %v1568 = vunpack.c.l.b16 %v1497
    %v1569 = vunpack.c.l.b16 %v1498
    %v1570 = vunpack.c.l.b16 %v1499
    %v1571 = vunpack.c.l.b16 %v1500
    %v1572 = vunpack.c.l.b16 %v1501
    %v1573 = vunpack.c.l.b16 %v1502
    %v1574 = vunpack.c.l.b16 %v1503
    %v1575 = vunpack.c.l.b16 %v1504
    %v1576 = vunpack.c.l.b16 %v1505
    %v1577 = vunpack.c.l.b16 %v1506
    %v1578 = vunpack.c.l.b16 %v1507
    %v1579 = vunpack.c.l.b16 %v1508
    %v1580 = vunpack.c.l.b16 %v1509
    %v1581 = vunpack.c.l.b16 %v1510
    %v1582 = vunpack.c.l.b16 %v1511
    %v1583 = vunpack.c.l.b16 %v1512
    %v1584 = vunpack.c.l.b16 %v1513
    %v1585 = vunpack.c.l.b16 %v1514
    %v1586 = vunpack.c.l.b16 %v1515
    %v1587 = vunpack.c.l.b16 %v1516
    %v1588 = vunpack.c.l.b16 %v1517
    %v1589 = vunpack.c.l.b16 %v1518
    %v1590 = vunpack.c.l.b16 %v1519
    %v1591 = vunpack.c.l.b16 %v1520
    %v1592 = vunpack.c.l.b16 %v1521
    %v1593 = vunpack.c.l.b16 %v1522
    %v1594 = vunpack.c.l.b16 %v1523
    %v1595 = vunpack.c.l.b16 %v1524
    %v1596 = vpack.c.b16 %v1565, %v1564
    %v1597 = vpack.c.b16 %v1567, %v1566
    %v1598 = vpack.c.b16 %v1569, %v1568
    %v1599 = vpack.c.b16 %v1571, %v1570
    %v1600 = vpack.c.b16 %v1573, %v1572
    %v1601 = vpack.c.b16 %v1575, %v1574
    %v1602 = vpack.c.b16 %v1577, %v1576
    %v1603 = vpack.c.b16 %v1579, %v1578
    %v1604 = vpack.c.b16 %v1581, %v1580
    %v1605 = vpack.c.b16 %v1583, %v1582
    %v1606 = vpack.c.b16 %v1585, %v1584
    %v1607 = vpack.c.b16 %v1587, %v1586
    %v1608 = vpack.c.b16 %v1589, %v1588
    %v1609 = vpack.c.b16 %v1591, %v1590
    %v1610 = vpack.c.b16 %v1593, %v1592
    %v1611 = vpack.c.b16 %v1595, %v1594
    %1628 = vmatprep.subr.bf16.mxu0 0
    %1629 = vmatpush1.bf16.msra.mxu0 %v1596
    %1630 = vmatprep.subr.bf16.mxu0 0
    %1631 = vmatpush1.bf16.msra.mxu0 %v1597
    %1632 = vmatprep.subr.bf16.mxu0 0
    %1633 = vmatpush1.bf16.msra.mxu0 %v1598
    %1634 = vmatprep.subr.bf16.mxu0 0
    %1635 = vmatpush1.bf16.msra.mxu0 %v1599
    %1636 = vmatprep.subr.bf16.mxu0 0
    %1637 = vmatpush1.bf16.msra.mxu0 %v1600
    %1638 = vmatprep.subr.bf16.mxu0 0
    %1639 = vmatpush1.bf16.msra.mxu0 %v1601
    %1640 = vmatprep.subr.bf16.mxu0 0
    %1641 = vmatpush1.bf16.msra.mxu0 %v1602
    %1642 = vmatprep.subr.bf16.mxu0 0
    %1643 = vmatpush1.bf16.msra.mxu0 %v1603
    %1644 = vmatprep.subr.bf16.mxu0 0
    %1645 = vmatpush1.bf16.msra.mxu0 %v1604
    %1646 = vmatprep.subr.bf16.mxu0 0
    %1647 = vmatpush1.bf16.msra.mxu0 %v1605
    %1648 = vmatprep.subr.bf16.mxu0 0
    %1649 = vmatpush1.bf16.msra.mxu0 %v1606
    %1650 = vmatprep.subr.bf16.mxu0 0
    %1651 = vmatpush1.bf16.msra.mxu0 %v1607
    %1652 = vmatprep.subr.bf16.mxu0 0
    %1653 = vmatpush1.bf16.msra.mxu0 %v1608
    %1654 = vmatprep.subr.bf16.mxu0 0
    %1655 = vmatpush1.bf16.msra.mxu0 %v1609
    %1656 = vmatprep.subr.bf16.mxu0 0
    %1657 = vmatpush1.bf16.msra.mxu0 %v1610
    %1658 = vmatprep.subr.bf16.mxu0 0
    %1659 = vmatpush1.bf16.msra.mxu0 %v1611
    %1660 = vmatprep.mubr.bf16.mxu0 %v430
    %1661 = vmatmul.mubr.bf16.gmra.mrb[0].mxu0 %v429
    %v1662 = vpop.f32.mrb[0].mxu0
    %v1663 = vadd.f32 %v1530, %v1662
    %v1664 = vpop.f32.mrb[0].mxu0
    %v1665 = vpop.f32.mrb[0].mxu0
    %v1666 = vpop.f32.mrb[0].mxu0
    %1667 = vdwg.mxu0
    %v1668 = vtanh.pop %v1663
    %vm1669 = vcmask 130048
    %1670 = vst.msk [vmem:[#allocation2 + $0x30] sm:$0xff] %vm1669, %v1668
    // Predicated region
    $region30: #{tpu_custom_call.1} parent=1 // pred_check
      _
    $region31: #{tpu_custom_call.1} parent=1 // pred_check_branch
      %1672 = sbr.rel (0) target = $region33
    $region32: #{tpu_custom_call.1} parent=1 // pred_region
      %s1674 = ssub.s32 896, 896
      %1675 = vsyncadd [#allocation3], %s1674
      %s1677 = sshll.u32 [#allocation2], 4
      %s1678 = int_to_ptr.vmem [resolvable:$true] %s1677
      %1680 = dma.vmem_to_hbm [thread:$0]  %s1678, 896, %s7, [#allocation3]
    $region33: #{tpu_custom_call.1} parent=1 // pred_fallthru
      _
    // Predicated region
    $region34: #{tpu_custom_call.1} parent=1 // pred_check
      _
    $region35: #{tpu_custom_call.1} parent=1 // pred_check_branch
      %1682 = sbr.rel (0) target = $region37
    $region36: #{tpu_custom_call.1} parent=1 // pred_region
      %1683 = dma.done [#allocation3], 896
    $region37: #{tpu_custom_call.1} parent=1 // pred_fallthru
      _
    %1684 = vsyncpa [#allocation3], 1

</llo_original>
